<compile_context>
chip_gen: v7x
topology: tpu7x:2x2x1
jax: 0.10.0
libtpu: 0.0.40
codegen_flags: <defaults>
</compile_context>

<pallas_src>
import functools

import numpy as np
import jax
import jax.numpy as jnp
from jax import lax
from jax.experimental import pallas as pl
from jax.experimental.pallas import tpu as pltpu


def _round_up(n, m):
    return ((n + m - 1) // m) * m


def _pow2_tile(pref, hw128):
    """Largest power-of-two multiple of 128 that is <= min(pref, hw128)."""
    cap = max(128, min(pref, hw128))
    t = 128
    while t * 2 <= cap:
        t *= 2
    return t


def _vmem_limit_bytes():
    try:
        cap = pltpu.get_tpu_info().vmem_capacity_bytes
    except Exception:
        return 32 * 1024 * 1024
    # ~3/4 of physical VMEM with headroom: ~96 MiB on v5e/v6e, ~48 MiB on v7x.
    return int(max(32 * 1024 * 1024, min(cap * 3 // 4, 100 * 1024 * 1024)))


def _bf16_eup_ok():
    # bf16 VPU/EUP exists on v6e / v7x; not on v5e or older.
    try:
        kind = jax.devices()[0].device_kind.lower()
    except Exception:
        return False
    return any(tag in kind for tag in ("v6", "v7", "7x"))


# ----------------------------------------------------------------------------
# Stage 1: fused Q/K/V projections (1x1 conv + folded inference BN + ReLU),
# channel-major.  Per grid step:
#   x tile:  (C, tp)                 input dtype, cast to compute dtype in-VMEM
#   w_c:     (3, Ts, C)  [wq1^T, wk1_local^T, wv_local^T]
#   w_t:     (2, Ts, Ts) [wq2^T, wk2^T]
#   sb:      (Ts, 8) f32 cols [sq1, bq1, sq2*T^-.5, bq2*T^-.5, sk1, sk2, bk2, sv]
#   bb:      (Ts, 2) f32 per-batch [bk1 + (mean@wk1_glob)*sk1, bv + (mean@wv_glob)*sv]
# ----------------------------------------------------------------------------
def _proj_kernel(x_ref, wc_ref, wt_ref, sb_ref, bb_ref, q_ref, k_ref, v_ref, *,
                 cdt):
    x = x_ref[0].astype(cdt)                       # (C, tp)
    sb = sb_ref[...]                               # (Ts, 8) f32
    bb = bb_ref[0]                                 # (Ts, 2) f32
    wq1, wk1l, wvl = wc_ref[0], wc_ref[1], wc_ref[2]   # (Ts, C)
    wq2, wk2 = wt_ref[0], wt_ref[1]                    # (Ts, Ts)

    def bn_relu(y, s, b):                          # y (Ts, tp) f32; s,b (Ts,1)
        return jnp.maximum(y * s + b, 0.0)

    q1 = bn_relu(jnp.dot(wq1, x, preferred_element_type=jnp.float32),
                 sb[:, 0:1], sb[:, 1:2])
    q = bn_relu(jnp.dot(wq2, q1.astype(cdt), preferred_element_type=jnp.float32),
                sb[:, 2:3], sb[:, 3:4])            # T^-0.5 folded into affine
    k1 = bn_relu(jnp.dot(wk1l, x, preferred_element_type=jnp.float32),
                 sb[:, 4:5], bb[:, 0:1])           # global-pool term in bias
    k = bn_relu(jnp.dot(wk2, k1.astype(cdt), preferred_element_type=jnp.float32),
                sb[:, 5:6], sb[:, 6:7])
    v = bn_relu(jnp.dot(wvl, x, preferred_element_type=jnp.float32),
                sb[:, 7:8], bb[:, 1:2])            # global-pool term in bias

    q_ref[0] = q.astype(q_ref.dtype)
    k_ref[0] = k.astype(k_ref.dtype)
    v_ref[0] = v.astype(v_ref.dtype)


# ----------------------------------------------------------------------------
# Stage 2: flash-style attention (online softmax over key tiles) with the
# output projection (T->C conv + folded BN + ReLU) fused into the final step.
# Q/K/V are channel-major (Ts, tile); output block is (C, tq), lane-dense.
# ----------------------------------------------------------------------------
def _attn_kernel(q_ref, k_ref, v_ref, wo_ref, sbo_ref, o_ref,
                 m_ref, l_ref, acc_ref, *, cdt, hw_valid, use_bf16_exp):
    ki = pl.program_id(2)

    @pl.when(ki == 0)
    def _():
        m_ref[...] = jnp.full(m_ref.shape, -1e30, jnp.float32)
        l_ref[...] = jnp.zeros(l_ref.shape, jnp.float32)
        acc_ref[...] = jnp.zeros(acc_ref.shape, jnp.float32)

    q = q_ref[0]                                   # (Ts, tq), scale pre-folded
    k = k_ref[0]                                   # (Ts, tk)
    tk = k.shape[1]
    # s[i, j] = sum_t q[t, i] * k[t, j]
    s = lax.dot_general(q, k, (((0,), (0,)), ((), ())),
                        preferred_element_type=jnp.float32)   # (tq, tk)

    if hw_valid is not None:                       # mask padded key tokens
        col = ki * tk + lax.broadcasted_iota(jnp.int32, (1, tk), 1)
        s = jnp.where(col < hw_valid, s, -1e30)

    m_prev = m_ref[...]
    m_new = jnp.maximum(m_prev, jnp.max(s, axis=-1, keepdims=True))
    alpha = jnp.exp(m_prev - m_new)
    z = s - m_new
    if use_bf16_exp:                               # v6e/v7x EUP relief
        p = jnp.exp(z.astype(jnp.bfloat16))
        p_sum = jnp.sum(p.astype(jnp.float32), axis=-1, keepdims=True)
    else:
        p = jnp.exp(z)
        p_sum = jnp.sum(p, axis=-1, keepdims=True)
    l_ref[...] = alpha * l_ref[...] + p_sum
    acc_ref[...] = alpha * acc_ref[...] + lax.dot_general(
        p.astype(cdt), v_ref[0], (((1,), (1,)), ((), ())),
        preferred_element_type=jnp.float32)        # (tq, Ts)
    m_ref[...] = m_new

    @pl.when(ki == pl.num_programs(2) - 1)
    def _():
        ctx = acc_ref[...] * (1.0 / l_ref[...])    # (tq, Ts)
        out = lax.dot_general(wo_ref[...], ctx.astype(cdt),
                              (((1,), (1,)), ((), ())),
                              preferred_element_type=jnp.float32)   # (C, tq)
        sbo = sbo_ref[...]                         # (C, 2) f32 [so | bo]
        out = jnp.maximum(out * sbo[:, 0:1] + sbo[:, 1:2], 0.0)
        o_ref[0] = out.astype(o_ref.dtype)


# ----------------------------------------------------------------------------
# Wrapper
# ----------------------------------------------------------------------------
def image_level_context(x_nchw, params, *, compute_dtype=jnp.bfloat16,
                        tq=512, tk=1024, tp=512):
    """ImageLevelContext forward (concat_input=False). x_nchw: (B, C, H, W)."""
    B, C, H, W = x_nchw.shape
    HW = H * W
    T = params["wq1"].shape[1]
    Ts = _round_up(T, 8)
    cdt = compute_dtype

    hw128 = _round_up(HW, 128)
    tq = _pow2_tile(tq, hw128)
    tk = _pow2_tile(tk, hw128)
    tp = _pow2_tile(tp, hw128)
    HWp = _round_up(HW, max(tq, tk, tp))   # power-of-two tiles all divide HWp
    mask_hw = HW if HWp != HW else None
    # Megacore note (v7x): the "parallel" grid axes are B and HWp/{tp,tq};
    # their product stays >= 2 for any B >= 2 or multi-tile map.

    # NCHW -> (B, C, HW): free reshape, no transpose / channel-pad / cast pass.
    x2 = x_nchw.reshape(B, C, HW)
    x_p = x2 if HWp == HW else jnp.pad(x2, ((0, 0), (0, 0), (0, HWp - HW)))

    # Global average pool; its (constant-over-tokens) contribution to the K/V
    # first layers is folded into per-batch biases.
    x_mean = jnp.mean(x2.astype(jnp.float32), axis=-1)          # (B, C)

    wk1, wv = params["wk1"], params["wv"]
    wk1g, wk1l = wk1[:C], wk1[C:]
    wvg, wvl = wv[:C], wv[C:]
    bk1_b = params["bk1"] + (x_mean @ wk1g) * params["sk1"]      # (B, T)
    bv_b = params["bv"] + (x_mean @ wvg) * params["sv"]          # (B, T)

    # matmul_norm scale T**-0.5 folded into the last query BN affine (positive
    # scale commutes with ReLU) -> no O(HW^2) scaling of the score matrix.
    scale = float(T) ** -0.5
    sq2 = params["sq2"] * scale
    bq2 = params["bq2"] * scale

    def pad_rows(a):            # (T, n) -> (Ts, n)
        return jnp.pad(a, ((0, Ts - T), (0, 0)))

    def pad_vec(a):             # (1, T) -> (Ts,)
        return jnp.pad(a[0], ((0, Ts - T),))

    # Transposed (out_ch, in_ch) weight slabs for channel-major compute.
    w_c = jnp.stack([pad_rows(params["wq1"].T),
                     pad_rows(wk1l.T),
                     pad_rows(wvl.T)], axis=0).astype(cdt)        # (3, Ts, C)
    w_t = jnp.stack([jnp.pad(params["wq2"].T, ((0, Ts - T), (0, Ts - T))),
                     jnp.pad(params["wk2"].T, ((0, Ts - T), (0, Ts - T)))],
                    axis=0).astype(cdt)                           # (2, Ts, Ts)
    sb = jnp.stack([pad_vec(params["sq1"]), pad_vec(params["bq1"]),
                    pad_vec(sq2), pad_vec(bq2),
                    pad_vec(params["sk1"]),
                    pad_vec(params["sk2"]), pad_vec(params["bk2"]),
                    pad_vec(params["sv"])], axis=1).astype(jnp.float32)  # (Ts,8)
    bb = jnp.stack([jnp.pad(bk1_b, ((0, 0), (0, Ts - T))),
                    jnp.pad(bv_b, ((0, 0), (0, Ts - T)))],
                   axis=2).astype(jnp.float32)                    # (B, Ts, 2)

    wo_t = jnp.pad(params["wo"].T, ((0, 0), (0, Ts - T))).astype(cdt)  # (C, Ts)
    sbo = jnp.stack([params["so"][0], params["bo"][0]],
                    axis=1).astype(jnp.float32)                   # (C, 2)

    vmem_limit = _vmem_limit_bytes()
    want_bf16_exp = (cdt == jnp.bfloat16) and _bf16_eup_ok()

    def run(single_buffer_consts, use_bf16_exp):
        def cspec(shape, index_map):
            # Grid-invariant operands: a single VMEM buffer is enough.
            if single_buffer_consts:
                return pl.BlockSpec(shape, index_map, pipeline_mode=pl.Buffered(1))
            return pl.BlockSpec(shape, index_map)

        # ---- stage 1: fused Q/K/V projections ------------------------------
        qkv_sd = jax.ShapeDtypeStruct((B, Ts, HWp), cdt)
        q_all, k_all, v_all = pl.pallas_call(
            functools.partial(_proj_kernel, cdt=cdt),
            out_shape=(qkv_sd, qkv_sd, qkv_sd),
            grid_spec=pltpu.PrefetchScalarGridSpec(
                num_scalar_prefetch=0,
                grid=(B, HWp // tp),
                in_specs=[
                    pl.BlockSpec((1, C, tp), lambda b, i: (b, 0, i)),
                    cspec((3, Ts, C), lambda b, i: (0, 0, 0)),
                    cspec((2, Ts, Ts), lambda b, i: (0, 0, 0)),
                    cspec((Ts, 8), lambda b, i: (0, 0)),
                    pl.BlockSpec((1, Ts, 2), lambda b, i: (b, 0, 0)),
                ],
                out_specs=[pl.BlockSpec((1, Ts, tp), lambda b, i: (b, 0, i))] * 3,
            ),
            compiler_params=pltpu.CompilerParams(
                dimension_semantics=("parallel", "parallel"),
                vmem_limit_bytes=vmem_limit),
        )(x_p, w_c, w_t, sb, bb)

        # ---- stage 2: flash attention + fused out_project -------------------
        out_p = pl.pallas_call(
            functools.partial(_attn_kernel, cdt=cdt, hw_valid=mask_hw,
                              use_bf16_exp=use_bf16_exp),
            out_shape=jax.ShapeDtypeStruct((B, C, HWp), x_nchw.dtype),
            grid_spec=pltpu.PrefetchScalarGridSpec(
                num_scalar_prefetch=0,
                grid=(B, HWp // tq, HWp // tk),
                in_specs=[
                    pl.BlockSpec((1, Ts, tq), lambda b, qi, ki: (b, 0, qi)),
                    pl.BlockSpec((1, Ts, tk), lambda b, qi, ki: (b, 0, ki)),
                    pl.BlockSpec((1, Ts, tk), lambda b, qi, ki: (b, 0, ki)),
                    cspec((C, Ts), lambda b, qi, ki: (0, 0)),
                    cspec((C, 2), lambda b, qi, ki: (0, 0)),
                ],
                out_specs=pl.BlockSpec((1, C, tq), lambda b, qi, ki: (b, 0, qi)),
                scratch_shapes=[pltpu.VMEM((tq, 1), jnp.float32),
                                pltpu.VMEM((tq, 1), jnp.float32),
                                pltpu.VMEM((tq, Ts), jnp.float32)],
            ),
            compiler_params=pltpu.CompilerParams(
                dimension_semantics=("parallel", "parallel", "arbitrary"),
                vmem_limit_bytes=vmem_limit),
        )(q_all, k_all, v_all, wo_t, sbo)
        return jax.block_until_ready(out_p)

    attempts = [(True, want_bf16_exp), (False, want_bf16_exp)]
    if want_bf16_exp:
        attempts.append((False, False))
    out_p, last_err = None, None
    for sb_flag, exp_flag in attempts:
        try:
            out_p = run(sb_flag, exp_flag)
            break
        except Exception as e:            # fall back if Buffered(1)/bf16-exp unsupported
            last_err = e
    if out_p is None:
        raise last_err

    out = out_p if HWp == HW else out_p[:, :, :HW]
    return out.reshape(B, C, H, W)


# ----------------------------------------------------------------------------
# Deterministic parameter construction (conv1x1 weight + folded inference BN).
# ----------------------------------------------------------------------------
def make_params(key, feats_channels, transform_channels):
    C, T = feats_channels, transform_channels
    eps = 1e-5

    def layer(k, cin, cout):
        kw, kg, kb, km, kv = jax.random.split(k, 5)
        w = 0.2 * jax.random.normal(kw, (cin, cout), jnp.float32)
        gamma = 1.0 + 0.1 * jax.random.normal(kg, (1, cout), jnp.float32)
        beta = 0.1 * jax.random.normal(kb, (1, cout), jnp.float32)
        mean = 0.1 * jax.random.normal(km, (1, cout), jnp.float32)
        var = jax.random.uniform(kv, (1, cout), jnp.float32, 0.5, 1.5)
        scale = gamma / jnp.sqrt(var + eps)
        bias = beta - mean * scale
        return w, scale, bias

    keys = jax.random.split(key, 6)
    p = {}
    for name, k, cin, cout in [("q1", keys[0], C, T), ("q2", keys[1], T, T),
                               ("k1", keys[2], 2 * C, T), ("k2", keys[3], T, T),
                               ("v", keys[4], 2 * C, T), ("o", keys[5], T, C)]:
        w, s, b = layer(k, cin, cout)
        p["w" + name], p["s" + name], p["b" + name] = w, s, b
    return p


# ----------------------------------------------------------------------------
# Pure-JAX reference (mirrors the PyTorch forward) for a correctness check.
# ----------------------------------------------------------------------------
def reference(x_nchw, params):
    B, C, H, W = x_nchw.shape
    T = params["wq1"].shape[1]
    x = jnp.transpose(x_nchw.reshape(B, C, H * W), (0, 2, 1))   # (B, HW, C)
    xg = jnp.mean(x, axis=1, keepdims=True)                     # (B, 1, C)
    key_in = jnp.concatenate([jnp.broadcast_to(xg, x.shape), x], axis=-1)

    def proj(inp, name):
        return jnp.maximum(
            inp @ params["w" + name] * params["s" + name] + params["b" + name], 0.0)

    q = proj(proj(x, "q1"), "q2")
    k = proj(proj(key_in, "k1"), "k2")
    v = proj(key_in, "v")
    sim = jnp.einsum("bqt,bkt->bqk", q, k) * (T ** -0.5)
    p = jax.nn.softmax(sim, axis=-1)
    ctx = jnp.einsum("bqk,bkt->bqt", p, v)
    out = proj(ctx, "o")
    return jnp.transpose(out, (0, 2, 1)).reshape(B, C, H, W)


if __name__ == "__main__":
    B, C, H, W = 2, 8, 16, 16          # feats_channels = 8
    T = 16                             # transform_channels = 16

    key = jax.random.PRNGKey(0)
    kx, kx2, kp = jax.random.split(key, 3)
    x = jax.random.normal(kx, (B, C, H, W), jnp.float32)
    params = make_params(kp, C, T)

    ref = jax.block_until_ready(reference(x, params))

    # Exact-math f32 path with small tiles (HW=256 -> 2 query x 2 key tiles, so
    # the online-softmax accumulation path is exercised).
    out_f32 = jax.block_until_ready(
        image_level_context(x, params, compute_dtype=jnp.float32,
                            tq=128, tk=128, tp=128))
    assert out_f32.shape == (B, C, H, W)
    np.testing.assert_allclose(np.asarray(out_f32), np.asarray(ref),
                               rtol=2e-4, atol=2e-4)

    # Default path: bf16 MXU operands / bf16 intermediates, f32 accumulation
    # and softmax stats (bf16 exponent only on v6e/v7x).
    out_bf16 = jax.block_until_ready(image_level_context(x, params))
    np.testing.assert_allclose(np.asarray(out_bf16), np.asarray(ref),
                               rtol=8e-2, atol=8e-2)

    # Non-128-divisible spatial size: exercises HW padding + key masking.
    xs = jax.random.normal(kx2, (B, C, 10, 10), jnp.float32)
    refs = jax.block_until_ready(reference(xs, params))
    outs = jax.block_until_ready(
        image_level_context(xs, params, compute_dtype=jnp.float32))
    np.testing.assert_allclose(np.asarray(outs), np.asarray(refs),
                               rtol=2e-4, atol=2e-4)

    print("KERNEL_OK")
</pallas_src>

<mosaic_0001>
module attributes {stable_mosaic.version = 11 : i64} {
  func.func @_proj_kernel(%arg0: i32, %arg1: i32, %arg2: memref<1x8x128xf32, #tpu.memory_space<vmem>>, %arg3: memref<3x16x8xf32, #tpu.memory_space<vmem>>, %arg4: memref<2x16x16xf32, #tpu.memory_space<vmem>>, %arg5: memref<16x8xf32, #tpu.memory_space<vmem>>, %arg6: memref<1x16x2xf32, #tpu.memory_space<vmem>>, %arg7: memref<1x16x128xf32, #tpu.memory_space<vmem>>, %arg8: memref<1x16x128xf32, #tpu.memory_space<vmem>>, %arg9: memref<1x16x128xf32, #tpu.memory_space<vmem>>) attributes {dimension_semantics = [#tpu.dimension_semantics<parallel>, #tpu.dimension_semantics<parallel>], iteration_bounds = array<i64: 2, 2>, scalar_prefetch = 0 : i64, scratch_operands = 0 : i64, tpu.core_type = #tpu.core_type<tc>, window_params = [{transform_indices = @transform_0, window_bounds = array<i64: 1, 8, 128>}, {pipeline_mode = #tpu.pipeline_mode<synchronous>, transform_indices = @transform_1, window_bounds = array<i64: 3, 16, 8>}, {pipeline_mode = #tpu.pipeline_mode<synchronous>, transform_indices = @transform_2, window_bounds = array<i64: 2, 16, 16>}, {pipeline_mode = #tpu.pipeline_mode<synchronous>, transform_indices = @transform_3, window_bounds = array<i64: 16, 8>}, {transform_indices = @transform_4, window_bounds = array<i64: 1, 16, 2>}, {transform_indices = @transform_5, window_bounds = array<i64: 1, 16, 128>}, {transform_indices = @transform_6, window_bounds = array<i64: 1, 16, 128>}, {transform_indices = @transform_7, window_bounds = array<i64: 1, 16, 128>}]} {
    %c0 = arith.constant 0 : index
    %c0_0 = arith.constant 0 : index
    %c0_1 = arith.constant 0 : index
    %0 = vector.load %arg2[%c0, %c0_0, %c0_1] : memref<1x8x128xf32, #tpu.memory_space<vmem>>, vector<1x8x128xf32>
    %1 = vector.shape_cast %0 : vector<1x8x128xf32> to vector<8x128xf32>
    %c0_2 = arith.constant 0 : index
    %c0_3 = arith.constant 0 : index
    %2 = vector.load %arg5[%c0_2, %c0_3] : memref<16x8xf32, #tpu.memory_space<vmem>>, vector<16x8xf32>
    %c0_4 = arith.constant 0 : index
    %c0_5 = arith.constant 0 : index
    %c0_6 = arith.constant 0 : index
    %3 = vector.load %arg6[%c0_4, %c0_5, %c0_6] : memref<1x16x2xf32, #tpu.memory_space<vmem>>, vector<1x16x2xf32>
    %4 = vector.shape_cast %3 : vector<1x16x2xf32> to vector<16x2xf32>
    %c0_7 = arith.constant 0 : index
    %c0_8 = arith.constant 0 : index
    %c0_9 = arith.constant 0 : index
    %5 = vector.load %arg3[%c0_7, %c0_8, %c0_9] : memref<3x16x8xf32, #tpu.memory_space<vmem>>, vector<1x16x8xf32>
    %6 = vector.shape_cast %5 : vector<1x16x8xf32> to vector<16x8xf32>
    %c1 = arith.constant 1 : index
    %c0_10 = arith.constant 0 : index
    %c0_11 = arith.constant 0 : index
    %7 = vector.load %arg3[%c1, %c0_10, %c0_11] : memref<3x16x8xf32, #tpu.memory_space<vmem>>, vector<1x16x8xf32>
    %8 = vector.shape_cast %7 : vector<1x16x8xf32> to vector<16x8xf32>
    %c2 = arith.constant 2 : index
    %c0_12 = arith.constant 0 : index
    %c0_13 = arith.constant 0 : index
    %9 = vector.load %arg3[%c2, %c0_12, %c0_13] : memref<3x16x8xf32, #tpu.memory_space<vmem>>, vector<1x16x8xf32>
    %10 = vector.shape_cast %9 : vector<1x16x8xf32> to vector<16x8xf32>
    %c0_14 = arith.constant 0 : index
    %c0_15 = arith.constant 0 : index
    %c0_16 = arith.constant 0 : index
    %11 = vector.load %arg4[%c0_14, %c0_15, %c0_16] : memref<2x16x16xf32, #tpu.memory_space<vmem>>, vector<1x16x16xf32>
    %12 = vector.shape_cast %11 : vector<1x16x16xf32> to vector<16x16xf32>
    %c1_17 = arith.constant 1 : index
    %c0_18 = arith.constant 0 : index
    %c0_19 = arith.constant 0 : index
    %13 = vector.load %arg4[%c1_17, %c0_18, %c0_19] : memref<2x16x16xf32, #tpu.memory_space<vmem>>, vector<1x16x16xf32>
    %14 = vector.shape_cast %13 : vector<1x16x16xf32> to vector<16x16xf32>
    %cst = arith.constant dense<0.000000e+00> : vector<16x128xf32>
    %15 = tpu.matmul %6, %1, %cst {dimension_numbers = #tpu.dot_dimension_numbers<[1], [0], [0], [1], [0, 0, 1, 1], [], []>} : vector<16x8xf32>, vector<8x128xf32>, vector<16x128xf32> -> vector<16x128xf32>
    %16 = vector.extract_strided_slice %2 {offsets = [0, 0], sizes = [16, 1], strides = [1, 1]} : vector<16x8xf32> to vector<16x1xf32>
    %17 = vector.extract_strided_slice %2 {offsets = [0, 1], sizes = [16, 1], strides = [1, 1]} : vector<16x8xf32> to vector<16x1xf32>
    %18 = vector.broadcast %16 : vector<16x1xf32> to vector<16x128xf32>
    %19 = arith.mulf %15, %18 : vector<16x128xf32>
    %20 = vector.broadcast %17 : vector<16x1xf32> to vector<16x128xf32>
    %21 = arith.addf %19, %20 : vector<16x128xf32>
    %cst_20 = arith.constant 0.000000e+00 : f32
    %22 = vector.broadcast %cst_20 : f32 to vector<16x128xf32>
    %23 = arith.maximumf %21, %22 : vector<16x128xf32>
    %cst_21 = arith.constant dense<0.000000e+00> : vector<16x128xf32>
    %24 = tpu.matmul %12, %23, %cst_21 {dimension_numbers = #tpu.dot_dimension_numbers<[1], [0], [0], [1], [0, 0, 1, 1], [], []>} : vector<16x16xf32>, vector<16x128xf32>, vector<16x128xf32> -> vector<16x128xf32>
    %25 = vector.extract_strided_slice %2 {offsets = [0, 2], sizes = [16, 1], strides = [1, 1]} : vector<16x8xf32> to vector<16x1xf32>
    %26 = vector.extract_strided_slice %2 {offsets = [0, 3], sizes = [16, 1], strides = [1, 1]} : vector<16x8xf32> to vector<16x1xf32>
    %27 = vector.broadcast %25 : vector<16x1xf32> to vector<16x128xf32>
    %28 = arith.mulf %24, %27 : vector<16x128xf32>
    %29 = vector.broadcast %26 : vector<16x1xf32> to vector<16x128xf32>
    %30 = arith.addf %28, %29 : vector<16x128xf32>
    %cst_22 = arith.constant 0.000000e+00 : f32
    %31 = vector.broadcast %cst_22 : f32 to vector<16x128xf32>
    %32 = arith.maximumf %30, %31 : vector<16x128xf32>
    %cst_23 = arith.constant dense<0.000000e+00> : vector<16x128xf32>
    %33 = tpu.matmul %8, %1, %cst_23 {dimension_numbers = #tpu.dot_dimension_numbers<[1], [0], [0], [1], [0, 0, 1, 1], [], []>} : vector<16x8xf32>, vector<8x128xf32>, vector<16x128xf32> -> vector<16x128xf32>
    %34 = vector.extract_strided_slice %2 {offsets = [0, 4], sizes = [16, 1], strides = [1, 1]} : vector<16x8xf32> to vector<16x1xf32>
    %35 = vector.extract_strided_slice %4 {offsets = [0, 0], sizes = [16, 1], strides = [1, 1]} : vector<16x2xf32> to vector<16x1xf32>
    %36 = vector.broadcast %34 : vector<16x1xf32> to vector<16x128xf32>
    %37 = arith.mulf %33, %36 : vector<16x128xf32>
    %38 = vector.broadcast %35 : vector<16x1xf32> to vector<16x128xf32>
    %39 = arith.addf %37, %38 : vector<16x128xf32>
    %cst_24 = arith.constant 0.000000e+00 : f32
    %40 = vector.broadcast %cst_24 : f32 to vector<16x128xf32>
    %41 = arith.maximumf %39, %40 : vector<16x128xf32>
    %cst_25 = arith.constant dense<0.000000e+00> : vector<16x128xf32>
    %42 = tpu.matmul %14, %41, %cst_25 {dimension_numbers = #tpu.dot_dimension_numbers<[1], [0], [0], [1], [0, 0, 1, 1], [], []>} : vector<16x16xf32>, vector<16x128xf32>, vector<16x128xf32> -> vector<16x128xf32>
    %43 = vector.extract_strided_slice %2 {offsets = [0, 5], sizes = [16, 1], strides = [1, 1]} : vector<16x8xf32> to vector<16x1xf32>
    %44 = vector.extract_strided_slice %2 {offsets = [0, 6], sizes = [16, 1], strides = [1, 1]} : vector<16x8xf32> to vector<16x1xf32>
    %45 = vector.broadcast %43 : vector<16x1xf32> to vector<16x128xf32>
    %46 = arith.mulf %42, %45 : vector<16x128xf32>
    %47 = vector.broadcast %44 : vector<16x1xf32> to vector<16x128xf32>
    %48 = arith.addf %46, %47 : vector<16x128xf32>
    %cst_26 = arith.constant 0.000000e+00 : f32
    %49 = vector.broadcast %cst_26 : f32 to vector<16x128xf32>
    %50 = arith.maximumf %48, %49 : vector<16x128xf32>
    %cst_27 = arith.constant dense<0.000000e+00> : vector<16x128xf32>
    %51 = tpu.matmul %10, %1, %cst_27 {dimension_numbers = #tpu.dot_dimension_numbers<[1], [0], [0], [1], [0, 0, 1, 1], [], []>} : vector<16x8xf32>, vector<8x128xf32>, vector<16x128xf32> -> vector<16x128xf32>
    %52 = vector.extract_strided_slice %2 {offsets = [0, 7], sizes = [16, 1], strides = [1, 1]} : vector<16x8xf32> to vector<16x1xf32>
    %53 = vector.extract_strided_slice %4 {offsets = [0, 1], sizes = [16, 1], strides = [1, 1]} : vector<16x2xf32> to vector<16x1xf32>
    %54 = vector.broadcast %52 : vector<16x1xf32> to vector<16x128xf32>
    %55 = arith.mulf %51, %54 : vector<16x128xf32>
    %56 = vector.broadcast %53 : vector<16x1xf32> to vector<16x128xf32>
    %57 = arith.addf %55, %56 : vector<16x128xf32>
    %cst_28 = arith.constant 0.000000e+00 : f32
    %58 = vector.broadcast %cst_28 : f32 to vector<16x128xf32>
    %59 = arith.maximumf %57, %58 : vector<16x128xf32>
    %c0_29 = arith.constant 0 : index
    %c0_30 = arith.constant 0 : index
    %c0_31 = arith.constant 0 : index
    %60 = vector.load %arg7[%c0_29, %c0_30, %c0_31] : memref<1x16x128xf32, #tpu.memory_space<vmem>>, vector<1x16x128xf32>
    %61 = vector.shape_cast %60 : vector<1x16x128xf32> to vector<16x128xf32>
    %62 = vector.shape_cast %32 : vector<16x128xf32> to vector<1x16x128xf32>
    tpu.vector_store %arg7[%c0_29, %c0_30, %c0_31], %62 {strides = array<i32>} : memref<1x16x128xf32, #tpu.memory_space<vmem>>, vector<1x16x128xf32>,
    %c0_32 = arith.constant 0 : index
    %c0_33 = arith.constant 0 : index
    %c0_34 = arith.constant 0 : index
    %63 = vector.load %arg8[%c0_32, %c0_33, %c0_34] : memref<1x16x128xf32, #tpu.memory_space<vmem>>, vector<1x16x128xf32>
    %64 = vector.shape_cast %63 : vector<1x16x128xf32> to vector<16x128xf32>
    %65 = vector.shape_cast %50 : vector<16x128xf32> to vector<1x16x128xf32>
    tpu.vector_store %arg8[%c0_32, %c0_33, %c0_34], %65 {strides = array<i32>} : memref<1x16x128xf32, #tpu.memory_space<vmem>>, vector<1x16x128xf32>,
    %c0_35 = arith.constant 0 : index
    %c0_36 = arith.constant 0 : index
    %c0_37 = arith.constant 0 : index
    %66 = vector.load %arg9[%c0_35, %c0_36, %c0_37] : memref<1x16x128xf32, #tpu.memory_space<vmem>>, vector<1x16x128xf32>
    %67 = vector.shape_cast %66 : vector<1x16x128xf32> to vector<16x128xf32>
    %68 = vector.shape_cast %59 : vector<16x128xf32> to vector<1x16x128xf32>
    tpu.vector_store %arg9[%c0_35, %c0_36, %c0_37], %68 {strides = array<i32>} : memref<1x16x128xf32, #tpu.memory_space<vmem>>, vector<1x16x128xf32>,
    return
  }
  func.func @transform_0(%arg0: i32, %arg1: i32) -> (i32, i32, i32) {
    %c0_i32 = arith.constant 0 : i32
    %c0_i32_0 = arith.constant 0 : i32
    return %arg0, %c0_i32, %arg1 : i32, i32, i32
  }
  func.func @transform_1(%arg0: i32, %arg1: i32) -> (i32, i32, i32) {
    %c0_i32 = arith.constant 0 : i32
    %c0_i32_0 = arith.constant 0 : i32
    %c0_i32_1 = arith.constant 0 : i32
    %c0_i32_2 = arith.constant 0 : i32
    return %c0_i32, %c0_i32_0, %c0_i32_1 : i32, i32, i32
  }
  func.func @transform_2(%arg0: i32, %arg1: i32) -> (i32, i32, i32) {
    %c0_i32 = arith.constant 0 : i32
    %c0_i32_0 = arith.constant 0 : i32
    %c0_i32_1 = arith.constant 0 : i32
    %c0_i32_2 = arith.constant 0 : i32
    return %c0_i32, %c0_i32_0, %c0_i32_1 : i32, i32, i32
  }
  func.func @transform_3(%arg0: i32, %arg1: i32) -> (i32, i32) {
    %c0_i32 = arith.constant 0 : i32
    %c0_i32_0 = arith.constant 0 : i32
    %c0_i32_1 = arith.constant 0 : i32
    return %c0_i32, %c0_i32_0 : i32, i32
  }
  func.func @transform_4(%arg0: i32, %arg1: i32) -> (i32, i32, i32) {
    %c0_i32 = arith.constant 0 : i32
    %c0_i32_0 = arith.constant 0 : i32
    %c0_i32_1 = arith.constant 0 : i32
    return %arg0, %c0_i32, %c0_i32_0 : i32, i32, i32
  }
  func.func @transform_5(%arg0: i32, %arg1: i32) -> (i32, i32, i32) {
    %c0_i32 = arith.constant 0 : i32
    %c0_i32_0 = arith.constant 0 : i32
    return %arg0, %c0_i32, %arg1 : i32, i32, i32
  }
  func.func @transform_6(%arg0: i32, %arg1: i32) -> (i32, i32, i32) {
    %c0_i32 = arith.constant 0 : i32
    %c0_i32_0 = arith.constant 0 : i32
    return %arg0, %c0_i32, %arg1 : i32, i32, i32
  }
  func.func @transform_7(%arg0: i32, %arg1: i32) -> (i32, i32, i32) {
    %c0_i32 = arith.constant 0 : i32
    %c0_i32_0 = arith.constant 0 : i32
    return %arg0, %c0_i32, %arg1 : i32, i32, i32
  }
}

module attributes {stable_mosaic.version = 11 : i64} {
  func.func @_proj_kernel(%arg0: i32, %arg1: i32, %arg2: memref<1x8x128xf32, #tpu.memory_space<vmem>>, %arg3: memref<3x16x8xf32, #tpu.memory_space<vmem>>, %arg4: memref<2x16x16xf32, #tpu.memory_space<vmem>>, %arg5: memref<16x8xf32, #tpu.memory_space<vmem>>, %arg6: memref<1x16x2xf32, #tpu.memory_space<vmem>>, %arg7: memref<1x16x128xf32, #tpu.memory_space<vmem>>, %arg8: memref<1x16x128xf32, #tpu.memory_space<vmem>>, %arg9: memref<1x16x128xf32, #tpu.memory_space<vmem>>) attributes {dimension_semantics = [#tpu.dimension_semantics<parallel>, #tpu.dimension_semantics<parallel>], iteration_bounds = array<i64: 2, 2>, scalar_prefetch = 0 : i64, scratch_operands = 0 : i64, tpu.core_type = #tpu.core_type<tc>, window_params = [{transform_indices = @transform_0, window_bounds = array<i64: 1, 8, 128>}, {pipeline_mode = #tpu.pipeline_mode<synchronous>, transform_indices = @transform_1, window_bounds = array<i64: 3, 16, 8>}, {pipeline_mode = #tpu.pipeline_mode<synchronous>, transform_indices = @transform_2, window_bounds = array<i64: 2, 16, 16>}, {pipeline_mode = #tpu.pipeline_mode<synchronous>, transform_indices = @transform_3, window_bounds = array<i64: 16, 8>}, {transform_indices = @transform_4, window_bounds = array<i64: 1, 16, 2>}, {transform_indices = @transform_5, window_bounds = array<i64: 1, 16, 128>}, {transform_indices = @transform_6, window_bounds = array<i64: 1, 16, 128>}, {transform_indices = @transform_7, window_bounds = array<i64: 1, 16, 128>}]} {
    %c0 = arith.constant 0 : index
    %c0_0 = arith.constant 0 : index
    %c0_1 = arith.constant 0 : index
    %0 = vector.load %arg2[%c0, %c0_0, %c0_1] : memref<1x8x128xf32, #tpu.memory_space<vmem>>, vector<1x8x128xf32>
    %1 = vector.shape_cast %0 : vector<1x8x128xf32> to vector<8x128xf32>
    %c0_2 = arith.constant 0 : index
    %c0_3 = arith.constant 0 : index
    %2 = vector.load %arg5[%c0_2, %c0_3] : memref<16x8xf32, #tpu.memory_space<vmem>>, vector<16x8xf32>
    %c0_4 = arith.constant 0 : index
    %c0_5 = arith.constant 0 : index
    %c0_6 = arith.constant 0 : index
    %3 = vector.load %arg6[%c0_4, %c0_5, %c0_6] : memref<1x16x2xf32, #tpu.memory_space<vmem>>, vector<1x16x2xf32>
    %4 = vector.shape_cast %3 : vector<1x16x2xf32> to vector<16x2xf32>
    %c0_7 = arith.constant 0 : index
    %c0_8 = arith.constant 0 : index
    %c0_9 = arith.constant 0 : index
    %5 = vector.load %arg3[%c0_7, %c0_8, %c0_9] : memref<3x16x8xf32, #tpu.memory_space<vmem>>, vector<1x16x8xf32>
    %6 = vector.shape_cast %5 : vector<1x16x8xf32> to vector<16x8xf32>
    %c1 = arith.constant 1 : index
    %c0_10 = arith.constant 0 : index
    %c0_11 = arith.constant 0 : index
    %7 = vector.load %arg3[%c1, %c0_10, %c0_11] : memref<3x16x8xf32, #tpu.memory_space<vmem>>, vector<1x16x8xf32>
    %8 = vector.shape_cast %7 : vector<1x16x8xf32> to vector<16x8xf32>
    %c2 = arith.constant 2 : index
    %c0_12 = arith.constant 0 : index
    %c0_13 = arith.constant 0 : index
    %9 = vector.load %arg3[%c2, %c0_12, %c0_13] : memref<3x16x8xf32, #tpu.memory_space<vmem>>, vector<1x16x8xf32>
    %10 = vector.shape_cast %9 : vector<1x16x8xf32> to vector<16x8xf32>
    %c0_14 = arith.constant 0 : index
    %c0_15 = arith.constant 0 : index
    %c0_16 = arith.constant 0 : index
    %11 = vector.load %arg4[%c0_14, %c0_15, %c0_16] : memref<2x16x16xf32, #tpu.memory_space<vmem>>, vector<1x16x16xf32>
    %12 = vector.shape_cast %11 : vector<1x16x16xf32> to vector<16x16xf32>
    %c1_17 = arith.constant 1 : index
    %c0_18 = arith.constant 0 : index
    %c0_19 = arith.constant 0 : index
    %13 = vector.load %arg4[%c1_17, %c0_18, %c0_19] : memref<2x16x16xf32, #tpu.memory_space<vmem>>, vector<1x16x16xf32>
    %14 = vector.shape_cast %13 : vector<1x16x16xf32> to vector<16x16xf32>
    %cst = arith.constant dense<0.000000e+00> : vector<16x128xf32>
    %15 = tpu.matmul %6, %1, %cst {dimension_numbers = #tpu.dot_dimension_numbers<[1], [0], [0], [1], [0, 0, 1, 1], [], []>} : vector<16x8xf32>, vector<8x128xf32>, vector<16x128xf32> -> vector<16x128xf32>
    %16 = vector.extract_strided_slice %2 {offsets = [0, 0], sizes = [16, 1], strides = [1, 1]} : vector<16x8xf32> to vector<16x1xf32>
    %17 = vector.extract_strided_slice %2 {offsets = [0, 1], sizes = [16, 1], strides = [1, 1]} : vector<16x8xf32> to vector<16x1xf32>
    %18 = vector.broadcast %16 : vector<16x1xf32> to vector<16x128xf32>
    %19 = arith.mulf %15, %18 : vector<16x128xf32>
    %20 = vector.broadcast %17 : vector<16x1xf32> to vector<16x128xf32>
    %21 = arith.addf %19, %20 : vector<16x128xf32>
    %cst_20 = arith.constant 0.000000e+00 : f32
    %22 = vector.broadcast %cst_20 : f32 to vector<16x128xf32>
    %23 = arith.maximumf %21, %22 : vector<16x128xf32>
    %cst_21 = arith.constant dense<0.000000e+00> : vector<16x128xf32>
    %24 = tpu.matmul %12, %23, %cst_21 {dimension_numbers = #tpu.dot_dimension_numbers<[1], [0], [0], [1], [0, 0, 1, 1], [], []>} : vector<16x16xf32>, vector<16x128xf32>, vector<16x128xf32> -> vector<16x128xf32>
    %25 = vector.extract_strided_slice %2 {offsets = [0, 2], sizes = [16, 1], strides = [1, 1]} : vector<16x8xf32> to vector<16x1xf32>
    %26 = vector.extract_strided_slice %2 {offsets = [0, 3], sizes = [16, 1], strides = [1, 1]} : vector<16x8xf32> to vector<16x1xf32>
    %27 = vector.broadcast %25 : vector<16x1xf32> to vector<16x128xf32>
    %28 = arith.mulf %24, %27 : vector<16x128xf32>
    %29 = vector.broadcast %26 : vector<16x1xf32> to vector<16x128xf32>
    %30 = arith.addf %28, %29 : vector<16x128xf32>
    %cst_22 = arith.constant 0.000000e+00 : f32
    %31 = vector.broadcast %cst_22 : f32 to vector<16x128xf32>
    %32 = arith.maximumf %30, %31 : vector<16x128xf32>
    %cst_23 = arith.constant dense<0.000000e+00> : vector<16x128xf32>
    %33 = tpu.matmul %8, %1, %cst_23 {dimension_numbers = #tpu.dot_dimension_numbers<[1], [0], [0], [1], [0, 0, 1, 1], [], []>} : vector<16x8xf32>, vector<8x128xf32>, vector<16x128xf32> -> vector<16x128xf32>
    %34 = vector.extract_strided_slice %2 {offsets = [0, 4], sizes = [16, 1], strides = [1, 1]} : vector<16x8xf32> to vector<16x1xf32>
    %35 = vector.extract_strided_slice %4 {offsets = [0, 0], sizes = [16, 1], strides = [1, 1]} : vector<16x2xf32> to vector<16x1xf32>
    %36 = vector.broadcast %34 : vector<16x1xf32> to vector<16x128xf32>
    %37 = arith.mulf %33, %36 : vector<16x128xf32>
    %38 = vector.broadcast %35 : vector<16x1xf32> to vector<16x128xf32>
    %39 = arith.addf %37, %38 : vector<16x128xf32>
    %cst_24 = arith.constant 0.000000e+00 : f32
    %40 = vector.broadcast %cst_24 : f32 to vector<16x128xf32>
    %41 = arith.maximumf %39, %40 : vector<16x128xf32>
    %cst_25 = arith.constant dense<0.000000e+00> : vector<16x128xf32>
    %42 = tpu.matmul %14, %41, %cst_25 {dimension_numbers = #tpu.dot_dimension_numbers<[1], [0], [0], [1], [0, 0, 1, 1], [], []>} : vector<16x16xf32>, vector<16x128xf32>, vector<16x128xf32> -> vector<16x128xf32>
    %43 = vector.extract_strided_slice %2 {offsets = [0, 5], sizes = [16, 1], strides = [1, 1]} : vector<16x8xf32> to vector<16x1xf32>
    %44 = vector.extract_strided_slice %2 {offsets = [0, 6], sizes = [16, 1], strides = [1, 1]} : vector<16x8xf32> to vector<16x1xf32>
    %45 = vector.broadcast %43 : vector<16x1xf32> to vector<16x128xf32>
    %46 = arith.mulf %42, %45 : vector<16x128xf32>
    %47 = vector.broadcast %44 : vector<16x1xf32> to vector<16x128xf32>
    %48 = arith.addf %46, %47 : vector<16x128xf32>
    %cst_26 = arith.constant 0.000000e+00 : f32
    %49 = vector.broadcast %cst_26 : f32 to vector<16x128xf32>
    %50 = arith.maximumf %48, %49 : vector<16x128xf32>
    %cst_27 = arith.constant dense<0.000000e+00> : vector<16x128xf32>
    %51 = tpu.matmul %10, %1, %cst_27 {dimension_numbers = #tpu.dot_dimension_numbers<[1], [0], [0], [1], [0, 0, 1, 1], [], []>} : vector<16x8xf32>, vector<8x128xf32>, vector<16x128xf32> -> vector<16x128xf32>
    %52 = vector.extract_strided_slice %2 {offsets = [0, 7], sizes = [16, 1], strides = [1, 1]} : vector<16x8xf32> to vector<16x1xf32>
    %53 = vector.extract_strided_slice %4 {offsets = [0, 1], sizes = [16, 1], strides = [1, 1]} : vector<16x2xf32> to vector<16x1xf32>
    %54 = vector.broadcast %52 : vector<16x1xf32> to vector<16x128xf32>
    %55 = arith.mulf %51, %54 : vector<16x128xf32>
    %56 = vector.broadcast %53 : vector<16x1xf32> to vector<16x128xf32>
    %57 = arith.addf %55, %56 : vector<16x128xf32>
    %cst_28 = arith.constant 0.000000e+00 : f32
    %58 = vector.broadcast %cst_28 : f32 to vector<16x128xf32>
    %59 = arith.maximumf %57, %58 : vector<16x128xf32>
    %c0_29 = arith.constant 0 : index
    %c0_30 = arith.constant 0 : index
    %c0_31 = arith.constant 0 : index
    %60 = vector.load %arg7[%c0_29, %c0_30, %c0_31] : memref<1x16x128xf32, #tpu.memory_space<vmem>>, vector<1x16x128xf32>
    %61 = vector.shape_cast %60 : vector<1x16x128xf32> to vector<16x128xf32>
    %62 = vector.shape_cast %32 : vector<16x128xf32> to vector<1x16x128xf32>
    tpu.vector_store %arg7[%c0_29, %c0_30, %c0_31], %62 {strides = array<i32>} : memref<1x16x128xf32, #tpu.memory_space<vmem>>, vector<1x16x128xf32>,
    %c0_32 = arith.constant 0 : index
    %c0_33 = arith.constant 0 : index
    %c0_34 = arith.constant 0 : index
    %63 = vector.load %arg8[%c0_32, %c0_33, %c0_34] : memref<1x16x128xf32, #tpu.memory_space<vmem>>, vector<1x16x128xf32>
    %64 = vector.shape_cast %63 : vector<1x16x128xf32> to vector<16x128xf32>
    %65 = vector.shape_cast %50 : vector<16x128xf32> to vector<1x16x128xf32>
    tpu.vector_store %arg8[%c0_32, %c0_33, %c0_34], %65 {strides = array<i32>} : memref<1x16x128xf32, #tpu.memory_space<vmem>>, vector<1x16x128xf32>,
    %c0_35 = arith.constant 0 : index
    %c0_36 = arith.constant 0 : index
    %c0_37 = arith.constant 0 : index
    %66 = vector.load %arg9[%c0_35, %c0_36, %c0_37] : memref<1x16x128xf32, #tpu.memory_space<vmem>>, vector<1x16x128xf32>
    %67 = vector.shape_cast %66 : vector<1x16x128xf32> to vector<16x128xf32>
    %68 = vector.shape_cast %59 : vector<16x128xf32> to vector<1x16x128xf32>
    tpu.vector_store %arg9[%c0_35, %c0_36, %c0_37], %68 {strides = array<i32>} : memref<1x16x128xf32, #tpu.memory_space<vmem>>, vector<1x16x128xf32>,
    return
  }
  func.func @transform_0(%arg0: i32, %arg1: i32) -> (i32, i32, i32) {
    %c0_i32 = arith.constant 0 : i32
    %c0_i32_0 = arith.constant 0 : i32
    return %arg0, %c0_i32, %arg1 : i32, i32, i32
  }
  func.func @transform_1(%arg0: i32, %arg1: i32) -> (i32, i32, i32) {
    %c0_i32 = arith.constant 0 : i32
    %c0_i32_0 = arith.constant 0 : i32
    %c0_i32_1 = arith.constant 0 : i32
    %c0_i32_2 = arith.constant 0 : i32
    return %c0_i32, %c0_i32_0, %c0_i32_1 : i32, i32, i32
  }
  func.func @transform_2(%arg0: i32, %arg1: i32) -> (i32, i32, i32) {
    %c0_i32 = arith.constant 0 : i32
    %c0_i32_0 = arith.constant 0 : i32
    %c0_i32_1 = arith.constant 0 : i32
    %c0_i32_2 = arith.constant 0 : i32
    return %c0_i32, %c0_i32_0, %c0_i32_1 : i32, i32, i32
  }
  func.func @transform_3(%arg0: i32, %arg1: i32) -> (i32, i32) {
    %c0_i32 = arith.constant 0 : i32
    %c0_i32_0 = arith.constant 0 : i32
    %c0_i32_1 = arith.constant 0 : i32
    return %c0_i32, %c0_i32_0 : i32, i32
  }
  func.func @transform_4(%arg0: i32, %arg1: i32) -> (i32, i32, i32) {
    %c0_i32 = arith.constant 0 : i32
    %c0_i32_0 = arith.constant 0 : i32
    %c0_i32_1 = arith.constant 0 : i32
    return %arg0, %c0_i32, %c0_i32_0 : i32, i32, i32
  }
  func.func @transform_5(%arg0: i32, %arg1: i32) -> (i32, i32, i32) {
    %c0_i32 = arith.constant 0 : i32
    %c0_i32_0 = arith.constant 0 : i32
    return %arg0, %c0_i32, %arg1 : i32, i32, i32
  }
  func.func @transform_6(%arg0: i32, %arg1: i32) -> (i32, i32, i32) {
    %c0_i32 = arith.constant 0 : i32
    %c0_i32_0 = arith.constant 0 : i32
    return %arg0, %c0_i32, %arg1 : i32, i32, i32
  }
  func.func @transform_7(%arg0: i32, %arg1: i32) -> (i32, i32, i32) {
    %c0_i32 = arith.constant 0 : i32
    %c0_i32_0 = arith.constant 0 : i32
    return %arg0, %c0_i32, %arg1 : i32, i32, i32
  }
}

</mosaic_0001>

<llo_original>
// kernel: tpu_custom_call.1
$region0: #{tpu_custom_call.1}
  #allocation0 [shape = 'u32[]', space=smem, size = 0x4, offset = 0x4, fixed_abs, tag = 'smem constant byte address 0x4 - core index']
  #allocation1 [shape = 'u32[144,128]{1,0:T(1,128)}', space=vmem, size = 0x12000, scoped, tag = 'internal scratch']
  %s0 = inlined_call_operand.vmem [shape: f32[2,8,256], index: 0, kind: input, shape index: {}]
  %s1 = inlined_call_operand.vmem [shape: f32[3,16,8], index: 1, kind: input, shape index: {}]
  %s2 = inlined_call_operand.vmem [shape: f32[2,16,16], index: 2, kind: input, shape index: {}]
  %s3 = inlined_call_operand.vmem [shape: f32[16,8], index: 3, kind: input, shape index: {}]
  %s4 = inlined_call_operand.vmem [shape: f32[2,16,2], index: 4, kind: input, shape index: {}]
  %s5 = inlined_call_operand.hbm [shape: f32[2,16,256], index: 5, kind: output, shape index: {0}]
  %s6 = inlined_call_operand.hbm [shape: f32[2,16,256], index: 6, kind: output, shape index: {1}]
  %s7 = inlined_call_operand.hbm [shape: f32[2,16,256], index: 7, kind: output, shape index: {2}]
  %8 = xla_tuple %s5, %s6, %s7
  %s9 = sld [smem:[#allocation0]]
  $region69: #{tpu_custom_call.1} parent=0
    _
  %s11 = ssub.s32 1, %s9
  %s12 = scalar_select 0, %s11, %s9
  $region1: #{tpu_custom_call.1} parent=0
    #allocation2 [shape = 'u8[16384]{0}', space=vmem, size = 0x4000, scoped, tag = 'output window, operand 0']
    #allocation3 [shape = 's32[2]{0}', space=sflag, size = 0x8, scoped, tag = 'scoped memory for tpu_custom_call.1']
    #allocation4 [shape = 'u8[16384]{0}', space=vmem, size = 0x4000, scoped, tag = 'output window, operand 1']
    #allocation5 [shape = 's32[2]{0}', space=sflag, size = 0x8, scoped, tag = 'scoped memory for tpu_custom_call.1']
    #allocation6 [shape = 'u8[16384]{0}', space=vmem, size = 0x4000, scoped, tag = 'output window, operand 2']
    %13 = vsyncpa [#allocation3], 0
    %s14 = scalar_lea.sflag [#allocation3], 1
    %15 = vsyncpa %s14, 0
    %16 = vsyncpa [#allocation5], 0
    %s17 = scalar_lea.sflag [#allocation5], 1
    %18 = vsyncpa %s17, 0
    loop: start=0, step=1, limit=6
    $region2: #{tpu_custom_call.1} parent=1 // loop_pre_header
      _
    $region3: #{tpu_custom_call.1} parent=1 // loop_header
      %s20 = sphi 0, %s24
      %p21 = scmp.ge.s32.totalorder %s20, 6
      %s27 = sphi 0, %s39
      %s28 = sphi 0, %s35
      %s29 = sphi 0, %s27
      %s30 = sphi 0, %s28
      %s31 = sphi 0, %s29
      %s32 = sphi 0, %s30
      %s44 = sphi 0, %s46
      %s47 = sphi 0, %s44
      %s48 = sphi 0, %s47
      %s64 = sphi 0, %s48
      %s68 = sphi 0, %s68
      %s70 = sphi 0, %s68
      %s71 = sphi 0, %s70
      %s85 = sphi 0, %s71
      %s89 = sphi 0, %s89
      %s91 = sphi 0, %s89
      %s92 = sphi 0, %s91
      %s106 = sphi 0, %s92
      %s110 = sphi 0, %s110
      %s112 = sphi 0, %s110
      %s113 = sphi 0, %s112
      %s127 = sphi 0, %s113
      %s133 = sphi 0, %s135
      %s136 = sphi 0, %s133
      %s137 = sphi 0, %s136
      %s153 = sphi 0, %s137
      %s161 = sphi 0, %s163
      %s164 = sphi 0, %s161
      %s165 = sphi 0, %s164
      %s181 = sphi 0, %s165
      %s189 = sphi 0, %s191
      %s192 = sphi 0, %s189
      %s193 = sphi 0, %s192
      %s209 = sphi 0, %s193
      %s217 = sphi 0, %s219
      %s220 = sphi 0, %s217
      %s221 = sphi 0, %s220
      %s237 = sphi 0, %s221
    $region4: #{tpu_custom_call.1} parent=1 // loop_header_branch
      %23 = sbr.rel (%p21) target = $region8
    $region5: #{tpu_custom_call.1} parent=1 // loop_body
      %s25 = ssub.s32 %s20, 1
      %s26 = ssub.s32 %s20, 2
      %s33 = sadd.s32 1, %s28
      %p34 = scmp.ge.s32.totalorder %s33, 2
      %s35 = scalar_select %p34, 0, %s33
      %s36 = sadd.s32 1, %s27
      %s37 = scalar_select %p34, %s36, %s27
      %p38 = scmp.ge.s32.totalorder %s37, 2
      %s39 = scalar_select %p38, 0, %s37
      %s40 = ssub.s32 %s27, %s39
      %s41 = ssub.s32 %s28, %s35
      %s42 = sor.u32 %s40, %s41
      %p43 = scmp.eq.s32.totalorder %s42, 0
      %s45 = sadd.s32 %s44, 1
      %s46 = scalar_select %p43, %s44, %s45
      %p49 = pneg %p43
      %p50 = scmp.eq.s32.totalorder %s20, 3
      %p51 = por %p49, %p50
      %p52 = scmp.ne.s32.totalorder %s44, %s47
      %p53 = scmp.eq.s32.totalorder %s20, 0
      %p54 = por %p52, %p53
      %p55 = scmp.ne.s32.totalorder %s44, %s47
      %p56 = scmp.eq.s32.totalorder %s25, 3
      %p57 = por %p55, %p56
      %p58 = scmp.ne.s32.totalorder %s47, %s48
      %p59 = scmp.eq.s32.totalorder %s25, 0
      %p60 = por %p58, %p59
      %p61 = scmp.ne.s32.totalorder %s47, %s48
      %p62 = scmp.eq.s32.totalorder %s26, 3
      %p63 = por %p61, %p62
      %p65 = scmp.ne.s32.totalorder %s48, %s64
      %p66 = scmp.eq.s32.totalorder %s26, 0
      %p67 = por %p65, %p66
      %s69 = sadd.s32 %s68, 1
      %p72 = scmp.eq.s32.totalorder %s20, 3
      %p73 = scmp.ne.s32.totalorder %s68, %s70
      %p74 = scmp.eq.s32.totalorder %s20, 0
      %p75 = por %p73, %p74
      %p76 = scmp.ne.s32.totalorder %s68, %s70
      %p77 = scmp.eq.s32.totalorder %s25, 3
      %p78 = por %p76, %p77
      %p79 = scmp.ne.s32.totalorder %s70, %s71
      %p80 = scmp.eq.s32.totalorder %s25, 0
      %p81 = por %p79, %p80
      %p82 = scmp.ne.s32.totalorder %s70, %s71
      %p83 = scmp.eq.s32.totalorder %s26, 3
      %p84 = por %p82, %p83
      %p86 = scmp.ne.s32.totalorder %s71, %s85
      %p87 = scmp.eq.s32.totalorder %s26, 0
      %p88 = por %p86, %p87
      %s90 = sadd.s32 %s89, 1
      %p93 = scmp.eq.s32.totalorder %s20, 3
      %p94 = scmp.ne.s32.totalorder %s89, %s91
      %p95 = scmp.eq.s32.totalorder %s20, 0
      %p96 = por %p94, %p95
      %p97 = scmp.ne.s32.totalorder %s89, %s91
      %p98 = scmp.eq.s32.totalorder %s25, 3
      %p99 = por %p97, %p98
      %p100 = scmp.ne.s32.totalorder %s91, %s92
      %p101 = scmp.eq.s32.totalorder %s25, 0
      %p102 = por %p100, %p101
      %p103 = scmp.ne.s32.totalorder %s91, %s92
      %p104 = scmp.eq.s32.totalorder %s26, 3
      %p105 = por %p103, %p104
      %p107 = scmp.ne.s32.totalorder %s92, %s106
      %p108 = scmp.eq.s32.totalorder %s26, 0
      %p109 = por %p107, %p108
      %s111 = sadd.s32 %s110, 1
      %p114 = scmp.eq.s32.totalorder %s20, 3
      %p115 = scmp.ne.s32.totalorder %s110, %s112
      %p116 = scmp.eq.s32.totalorder %s20, 0
      %p117 = por %p115, %p116
      %p118 = scmp.ne.s32.totalorder %s110, %s112
      %p119 = scmp.eq.s32.totalorder %s25, 3
      %p120 = por %p118, %p119
      %p121 = scmp.ne.s32.totalorder %s112, %s113
      %p122 = scmp.eq.s32.totalorder %s25, 0
      %p123 = por %p121, %p122
      %p124 = scmp.ne.s32.totalorder %s112, %s113
      %p125 = scmp.eq.s32.totalorder %s26, 3
      %p126 = por %p124, %p125
      %p128 = scmp.ne.s32.totalorder %s113, %s127
      %p129 = scmp.eq.s32.totalorder %s26, 0
      %p130 = por %p128, %p129
      %s131 = ssub.s32 %s27, %s39
      %p132 = scmp.eq.s32.totalorder %s131, 0
      %s134 = sadd.s32 %s133, 1
      %s135 = scalar_select %p132, %s133, %s134
      %p138 = pneg %p132
      %p139 = scmp.eq.s32.totalorder %s20, 3
      %p140 = por %p138, %p139
      %p141 = scmp.ne.s32.totalorder %s133, %s136
      %p142 = scmp.eq.s32.totalorder %s20, 0
      %p143 = por %p141, %p142
      %p144 = scmp.ne.s32.totalorder %s133, %s136
      %p145 = scmp.eq.s32.totalorder %s25, 3
      %p146 = por %p144, %p145
      %p147 = scmp.ne.s32.totalorder %s136, %s137
      %p148 = scmp.eq.s32.totalorder %s25, 0
      %p149 = por %p147, %p148
      %p150 = scmp.ne.s32.totalorder %s136, %s137
      %p151 = scmp.eq.s32.totalorder %s26, 3
      %p152 = por %p150, %p151
      %p154 = scmp.ne.s32.totalorder %s137, %s153
      %p155 = scmp.eq.s32.totalorder %s26, 0
      %p156 = por %p154, %p155
      %s157 = ssub.s32 %s27, %s39
      %s158 = ssub.s32 %s28, %s35
      %s159 = sor.u32 %s157, %s158
      %p160 = scmp.eq.s32.totalorder %s159, 0
      %s162 = sadd.s32 %s161, 1
      %s163 = scalar_select %p160, %s161, %s162
      %p166 = pneg %p160
      %p167 = scmp.eq.s32.totalorder %s20, 3
      %p168 = por %p166, %p167
      %p169 = scmp.ne.s32.totalorder %s161, %s164
      %p170 = scmp.eq.s32.totalorder %s20, 0
      %p171 = por %p169, %p170
      %p172 = scmp.ne.s32.totalorder %s161, %s164
      %p173 = scmp.eq.s32.totalorder %s25, 3
      %p174 = por %p172, %p173
      %p175 = scmp.ne.s32.totalorder %s164, %s165
      %p176 = scmp.eq.s32.totalorder %s25, 0
      %p177 = por %p175, %p176
      %p178 = scmp.ne.s32.totalorder %s164, %s165
      %p179 = scmp.eq.s32.totalorder %s26, 3
      %p180 = por %p178, %p179
      %p182 = scmp.ne.s32.totalorder %s165, %s181
      %p183 = scmp.eq.s32.totalorder %s26, 0
      %p184 = por %p182, %p183
      %s185 = ssub.s32 %s27, %s39
      %s186 = ssub.s32 %s28, %s35
      %s187 = sor.u32 %s185, %s186
      %p188 = scmp.eq.s32.totalorder %s187, 0
      %s190 = sadd.s32 %s189, 1
      %s191 = scalar_select %p188, %s189, %s190
      %p194 = pneg %p188
      %p195 = scmp.eq.s32.totalorder %s20, 3
      %p196 = por %p194, %p195
      %p197 = scmp.ne.s32.totalorder %s189, %s192
      %p198 = scmp.eq.s32.totalorder %s20, 0
      %p199 = por %p197, %p198
      %p200 = scmp.ne.s32.totalorder %s189, %s192
      %p201 = scmp.eq.s32.totalorder %s25, 3
      %p202 = por %p200, %p201
      %p203 = scmp.ne.s32.totalorder %s192, %s193
      %p204 = scmp.eq.s32.totalorder %s25, 0
      %p205 = por %p203, %p204
      %p206 = scmp.ne.s32.totalorder %s192, %s193
      %p207 = scmp.eq.s32.totalorder %s26, 3
      %p208 = por %p206, %p207
      %p210 = scmp.ne.s32.totalorder %s193, %s209
      %p211 = scmp.eq.s32.totalorder %s26, 0
      %p212 = por %p210, %p211
      %s213 = ssub.s32 %s27, %s39
      %s214 = ssub.s32 %s28, %s35
      %s215 = sor.u32 %s213, %s214
      %p216 = scmp.eq.s32.totalorder %s215, 0
      %s218 = sadd.s32 %s217, 1
      %s219 = scalar_select %p216, %s217, %s218
      %p222 = pneg %p216
      %p223 = scmp.eq.s32.totalorder %s20, 3
      %p224 = por %p222, %p223
      %p225 = scmp.ne.s32.totalorder %s217, %s220
      %p226 = scmp.eq.s32.totalorder %s20, 0
      %p227 = por %p225, %p226
      %p228 = scmp.ne.s32.totalorder %s217, %s220
      %p229 = scmp.eq.s32.totalorder %s25, 3
      %p230 = por %p228, %p229
      %p231 = scmp.ne.s32.totalorder %s220, %s221
      %p232 = scmp.eq.s32.totalorder %s25, 0
      %p233 = por %p231, %p232
      %p234 = scmp.ne.s32.totalorder %s220, %s221
      %p235 = scmp.eq.s32.totalorder %s26, 3
      %p236 = por %p234, %p235
      %p238 = scmp.ne.s32.totalorder %s221, %s237
      %p239 = scmp.eq.s32.totalorder %s26, 0
      %p240 = por %p238, %p239
      %p241 = scmp.le.s32.totalorder 1, %s20
      %p242 = scmp.lt.s32.totalorder %s20, 5
      %p243 = pnand %p241, %p242
      %p244 = pneg %p243
      // Predicated region
      $region9: #{tpu_custom_call.1} parent=5 // pred_check
        _
      $region10: #{tpu_custom_call.1} parent=5 // pred_check_branch
        %246 = sbr.rel (%p243) target = $region12
      $region11: #{tpu_custom_call.1} parent=5 // pred_region
        %s247 = ssub.s32 %s20, 1
        // Predicated region
        $region13: #{tpu_custom_call.1} parent=11 // pred_check
          %p248 = pneg %p81
        $region14: #{tpu_custom_call.1} parent=11 // pred_check_branch
          %250 = sbr.rel (%p248) target = $region16
        $region15: #{tpu_custom_call.1} parent=11 // pred_region
          _
        $region16: #{tpu_custom_call.1} parent=11 // pred_fallthru
          _
        // Predicated region
        $region17: #{tpu_custom_call.1} parent=11 // pred_check
          %p251 = pneg %p102
        $region18: #{tpu_custom_call.1} parent=11 // pred_check_branch
          %253 = sbr.rel (%p251) target = $region20
        $region19: #{tpu_custom_call.1} parent=11 // pred_region
          _
        $region20: #{tpu_custom_call.1} parent=11 // pred_fallthru
          _
        // Predicated region
        $region21: #{tpu_custom_call.1} parent=11 // pred_check
          %p254 = pneg %p123
        $region22: #{tpu_custom_call.1} parent=11 // pred_check_branch
          %256 = sbr.rel (%p254) target = $region24
        $region23: #{tpu_custom_call.1} parent=11 // pred_region
          _
        $region24: #{tpu_custom_call.1} parent=11 // pred_fallthru
          _
      $region12: #{tpu_custom_call.1} parent=5 // pred_fallthru
        _
      %p257 = scmp.lt.s32.totalorder %s20, 4
      // Predicated region
      $region25: #{tpu_custom_call.1} parent=5 // pred_check
        %p258 = pneg %p257
      $region26: #{tpu_custom_call.1} parent=5 // pred_check_branch
        %260 = sbr.rel (%p258) target = $region28
      $region27: #{tpu_custom_call.1} parent=5 // pred_region
        // Predicated region
        $region29: #{tpu_custom_call.1} parent=27 // pred_check
          %p261 = pneg %p54
        $region30: #{tpu_custom_call.1} parent=27 // pred_check_branch
          %263 = sbr.rel (%p261) target = $region32
        $region31: #{tpu_custom_call.1} parent=27 // pred_region
          %p264 = scmp.lt.s32.totalorder %s27, 1
          %s265 = scalar_select %p264, %s27, 1
          %p266 = scmp.lt.s32.totalorder %s28, 1
          %s267 = scalar_select %p266, %s28, 1
          %s268 = smul.addr %s265, 2
          %s269 = sadd.s32 %s267, %s268
          %s270 = smul.addr %s269, 8
          %s271 = scalar_lea.vmem %s0, %s270
        $region32: #{tpu_custom_call.1} parent=27 // pred_fallthru
          _
        // Predicated region
        $region33: #{tpu_custom_call.1} parent=27 // pred_check
          %p272 = pneg %p143
        $region34: #{tpu_custom_call.1} parent=27 // pred_check_branch
          %274 = sbr.rel (%p272) target = $region36
        $region35: #{tpu_custom_call.1} parent=27 // pred_region
          %p275 = scmp.lt.s32.totalorder %s27, 1
          %s276 = scalar_select %p275, %s27, 1
          %s277 = smul.addr %s276, 2
          %s278 = smul.addr %s277, 8
          %s279 = scalar_lea.vmem %s4, %s278
        $region36: #{tpu_custom_call.1} parent=27 // pred_fallthru
          _
      $region28: #{tpu_custom_call.1} parent=5 // pred_fallthru
        _
      %p280 = scmp.le.s32.totalorder 1, %s20
      %p281 = scmp.lt.s32.totalorder %s20, 5
      %p282 = pnand %p280, %p281
      %p283 = pneg %p282
      // Predicated region
      $region37: #{tpu_custom_call.1} parent=5 // pred_check
        _
      $region38: #{tpu_custom_call.1} parent=5 // pred_check_branch
        %285 = sbr.rel (%p282) target = $region40
      $region39: #{tpu_custom_call.1} parent=5 // pred_region
        %s286 = ssub.s32 %s20, 1
        %p287 = scmp.lt.s32.totalorder %s29, 1
        %s288 = scalar_select %p287, %s29, 1
        %p289 = scmp.lt.s32.totalorder %s30, 1
        %s290 = scalar_select %p289, %s30, 1
        %s291 = smul.addr %s288, 2
        %s292 = sadd.s32 %s290, %s291
        %s293 = smul.addr %s292, 8
        %s294 = scalar_lea.vmem %s0, %s293
        %p295 = pneg %p60
        %p296 = pneg %p57
        %p297 = pneg %p81
        %p298 = pneg %p78
        %p299 = pneg %p102
        %p300 = pneg %p99
        %p301 = pneg %p123
        %p302 = pneg %p120
        %p303 = scmp.lt.s32.totalorder %s29, 1
        %s304 = scalar_select %p303, %s29, 1
        %s305 = smul.addr %s304, 2
        %s306 = smul.addr %s305, 8
        %s307 = scalar_lea.vmem %s4, %s306
        %p308 = pneg %p149
        %p309 = pneg %p146
        %p310 = pneg %p177
        %p311 = pneg %p174
        %s312 = sand.u32 %s164, 1
        %s313 = scalar_lea.sflag [#allocation3], %s312
        %s314 = sand.u32 %s164, 1
        %s315 = smul.addr %s314, 16
        %s316 = scalar_lea.vmem [#allocation2], %s315
        %p317 = pneg %p205
        %p318 = pneg %p202
        %s319 = sand.u32 %s25, 1
        %s320 = scalar_lea.sflag [#allocation5], %s319
        %s321 = sand.u32 %s192, 1
        %s322 = smul.addr %s321, 16
        %s323 = scalar_lea.vmem [#allocation4], %s322
        %p324 = pneg %p233
        %p325 = pneg %p230
        %s326 = sand.u32 %s25, 1
        %s327 = scalar_lea.sflag [#allocation5], %s326
        %s328 = sand.u32 %s220, 1
        %s329 = smul.addr %s328, 16
        %s330 = scalar_lea.vmem [#allocation6], %s329
        %p331 = scmp.lt.s32.totalorder %s29, 1
        %s332 = scalar_select %p331, %s29, 1
        %p333 = scmp.lt.s32.totalorder %s30, 1
        %s334 = scalar_select %p333, %s30, 1
        %s335 = smul.addr %s332, 2
        %s336 = sadd.s32 %s334, %s335
        %s337 = smul.addr %s336, 8
        %s338 = scalar_lea.vmem %s0, %s337
        %p339 = scmp.lt.s32.totalorder %s29, 1
        %s340 = scalar_select %p339, %s29, 1
        %s341 = smul.addr %s340, 2
        %s342 = smul.addr %s341, 8
        %s343 = scalar_lea.vmem %s4, %s342
        %v344 = vld [vmem:[%s338] sm:$0xff]
        %v345 = vld [vmem:[%s3] sm:$0xff]
        %v346 = vld [vmem:[%s3 + $0x8] sm:$0xff]
        %v347 = vld [vmem:[%s343] sm:$0xff]
        %v348 = vld [vmem:[%s343 + $0x8] sm:$0xff]
        %v349 = vld [vmem:[%s1] sm:$0xff]
        %v350 = vld [vmem:[%s1 + $0x8] sm:$0xff]
        %s351 = scalar_lea.vmem %s1, 16
        %v352 = vld [vmem:[%s351] sm:$0xff]
        %v353 = vld [vmem:[%s351 + $0x8] sm:$0xff]
        %s354 = scalar_lea.vmem %s1, 32
        %v355 = vld [vmem:[%s354] sm:$0xff]
        %v356 = vld [vmem:[%s354 + $0x8] sm:$0xff]
        %v357 = vld [vmem:[%s2] sm:$0xff]
        %v358 = vld [vmem:[%s2 + $0x8] sm:$0xff]
        %s359 = scalar_lea.vmem %s2, 16
        %v360 = vld [vmem:[%s359] sm:$0xff]
        %v361 = vld [vmem:[%s359 + $0x8] sm:$0xff]
        %vm362 = vcmask 64512
        %v364 = vsel %vm362, %v349, 0
        %v367 = vsel %vm362, %v350, 0
        %369 = vmatprep.subr.mxu0 0.0
        %370 = vmatpush1.msra.mxu0 %v344
        %371 = vmatprep.subr.mxu0 0.0
        %372 = vmatpush1.msra.mxu0 0.0
        %373 = vmatprep.subr.mxu0 0.0
        %374 = vmatpush1.msra.mxu0 0.0
        %375 = vmatprep.subr.mxu0 0.0
        %376 = vmatpush1.msra.mxu0 0.0
        %377 = vmatprep.subr.mxu0 0.0
        %378 = vmatpush1.msra.mxu0 0.0
        %379 = vmatprep.subr.mxu0 0.0
        %380 = vmatpush1.msra.mxu0 0.0
        %381 = vmatprep.subr.mxu0 0.0
        %382 = vmatpush1.msra.mxu0 0.0
        %383 = vmatprep.subr.mxu0 0.0
        %384 = vmatpush1.msra.mxu0 0.0
        %385 = vmatprep.subr.mxu0 0.0
        %386 = vmatpush1.msra.mxu0 0.0
        %387 = vmatprep.subr.mxu0 0.0
        %388 = vmatpush1.msra.mxu0 0.0
        %389 = vmatprep.subr.mxu0 0.0
        %390 = vmatpush1.msra.mxu0 0.0
        %391 = vmatprep.subr.mxu0 0.0
        %392 = vmatpush1.msra.mxu0 0.0
        %393 = vmatprep.subr.mxu0 0.0
        %394 = vmatpush1.msra.mxu0 0.0
        %395 = vmatprep.subr.mxu0 0.0
        %396 = vmatpush1.msra.mxu0 0.0
        %397 = vmatprep.subr.mxu0 0.0
        %398 = vmatpush1.msra.mxu0 0.0
        %399 = vmatprep.subr.mxu0 0.0
        %400 = vmatpush1.msra.mxu0 0.0
        %401 = vmatprep.subr.mxu0 0.0
        %402 = vmatpush1.msra.mxu0 0.0
        %403 = vmatprep.subr.mxu0 0.0
        %404 = vmatpush1.msra.mxu0 0.0
        %405 = vmatprep.subr.mxu0 0.0
        %406 = vmatpush1.msra.mxu0 0.0
        %407 = vmatprep.subr.mxu0 0.0
        %408 = vmatpush1.msra.mxu0 0.0
        %409 = vmatprep.subr.mxu0 0.0
        %410 = vmatpush1.msra.mxu0 0.0
        %411 = vmatprep.subr.mxu0 0.0
        %412 = vmatpush1.msra.mxu0 0.0
        %413 = vmatprep.subr.mxu0 0.0
        %414 = vmatpush1.msra.mxu0 0.0
        %415 = vmatprep.subr.mxu0 0.0
        %416 = vmatpush1.msra.mxu0 0.0
        %417 = vmatprep.subr.mxu0 0.0
        %418 = vmatpush1.msra.mxu0 0.0
        %419 = vmatprep.subr.mxu0 0.0
        %420 = vmatpush1.msra.mxu0 0.0
        %421 = vmatprep.subr.mxu0 0.0
        %422 = vmatpush1.msra.mxu0 0.0
        %423 = vmatprep.subr.mxu0 0.0
        %424 = vmatpush1.msra.mxu0 0.0
        %425 = vmatprep.subr.mxu0 0.0
        %426 = vmatpush1.msra.mxu0 0.0
        %427 = vmatprep.subr.mxu0 0.0
        %428 = vmatpush1.msra.mxu0 0.0
        %429 = vmatprep.subr.mxu0 0.0
        %430 = vmatpush1.msra.mxu0 0.0
        %431 = vmatprep.subr.mxu0 0.0
        %432 = vmatpush1.msra.mxu0 0.0
        %433 = vmatprep.mubr.f32.mxu0 0.0
        %434 = vmatmul.mubr.f32.gmra.mrb[0].mxu0 %v364
        %v435 = vpop.f32.mrb[0].mxu0
        %v436 = vadd.f32 0.0, %v435
        %v437 = vpop.f32.mrb[0].mxu0
        %438 = vmatprep.mubr.f32.mxu0 0.0
        %439 = vmatmul.mubr.f32.gmra.mrb[0].mxu0 %v367
        %v440 = vpop.f32.mrb[0].mxu0
        %v441 = vadd.f32 0.0, %v440
        %v442 = vpop.f32.mrb[0].mxu0
        %443 = vdwg.mxu0
        %445 = vset.pattern.permute.xlu0 0
        %446 = vperm.xlu0 %445, %v345
        %v447 = vpop.permute.xlu0 %446
        %450 = vset.pattern.permute.xlu0 0
        %451 = vperm.xlu0 %450, %v346
        %v452 = vpop.permute.xlu0 %451
        %v454 = vmul.f32 %v436, %v447
        %v455 = vmul.f32 %v441, %v452
        %456 = vset.pattern.permute.xlu0 1
        %457 = vperm.xlu0 %456, %v345
        %v458 = vpop.permute.xlu0 %457
        %460 = vset.pattern.permute.xlu0 1
        %461 = vperm.xlu0 %460, %v346
        %v462 = vpop.permute.xlu0 %461
        %v464 = vadd.f32 %v454, %v458
        %v465 = vadd.f32 %v455, %v462
        %v466 = vmax.f32 %v464, 0.0
        %v467 = vmax.f32 %v465, 0.0
        %vm468 = vcmask 130048
        %v470 = vsel %vm468, %v357, 0
        %v473 = vsel %vm468, %v358, 0
        %475 = vmatprep.subr.mxu0 0.0
        %476 = vmatpush1.msra.mxu0 %v466
        %477 = vmatprep.subr.mxu0 0.0
        %478 = vmatpush1.msra.mxu0 %v467
        %479 = vmatprep.subr.mxu0 0.0
        %480 = vmatpush1.msra.mxu0 0.0
        %481 = vmatprep.subr.mxu0 0.0
        %482 = vmatpush1.msra.mxu0 0.0
        %483 = vmatprep.subr.mxu0 0.0
        %484 = vmatpush1.msra.mxu0 0.0
        %485 = vmatprep.subr.mxu0 0.0
        %486 = vmatpush1.msra.mxu0 0.0
        %487 = vmatprep.subr.mxu0 0.0
        %488 = vmatpush1.msra.mxu0 0.0
        %489 = vmatprep.subr.mxu0 0.0
        %490 = vmatpush1.msra.mxu0 0.0
        %491 = vmatprep.subr.mxu0 0.0
        %492 = vmatpush1.msra.mxu0 0.0
        %493 = vmatprep.subr.mxu0 0.0
        %494 = vmatpush1.msra.mxu0 0.0
        %495 = vmatprep.subr.mxu0 0.0
        %496 = vmatpush1.msra.mxu0 0.0
        %497 = vmatprep.subr.mxu0 0.0
        %498 = vmatpush1.msra.mxu0 0.0
        %499 = vmatprep.subr.mxu0 0.0
        %500 = vmatpush1.msra.mxu0 0.0
        %501 = vmatprep.subr.mxu0 0.0
        %502 = vmatpush1.msra.mxu0 0.0
        %503 = vmatprep.subr.mxu0 0.0
        %504 = vmatpush1.msra.mxu0 0.0
        %505 = vmatprep.subr.mxu0 0.0
        %506 = vmatpush1.msra.mxu0 0.0
        %507 = vmatprep.subr.mxu0 0.0
        %508 = vmatpush1.msra.mxu0 0.0
        %509 = vmatprep.subr.mxu0 0.0
        %510 = vmatpush1.msra.mxu0 0.0
        %511 = vmatprep.subr.mxu0 0.0
        %512 = vmatpush1.msra.mxu0 0.0
        %513 = vmatprep.subr.mxu0 0.0
        %514 = vmatpush1.msra.mxu0 0.0
        %515 = vmatprep.subr.mxu0 0.0
        %516 = vmatpush1.msra.mxu0 0.0
        %517 = vmatprep.subr.mxu0 0.0
        %518 = vmatpush1.msra.mxu0 0.0
        %519 = vmatprep.subr.mxu0 0.0
        %520 = vmatpush1.msra.mxu0 0.0
        %521 = vmatprep.subr.mxu0 0.0
        %522 = vmatpush1.msra.mxu0 0.0
        %523 = vmatprep.subr.mxu0 0.0
        %524 = vmatpush1.msra.mxu0 0.0
        %525 = vmatprep.subr.mxu0 0.0
        %526 = vmatpush1.msra.mxu0 0.0
        %527 = vmatprep.subr.mxu0 0.0
        %528 = vmatpush1.msra.mxu0 0.0
        %529 = vmatprep.subr.mxu0 0.0
        %530 = vmatpush1.msra.mxu0 0.0
        %531 = vmatprep.subr.mxu0 0.0
        %532 = vmatpush1.msra.mxu0 0.0
        %533 = vmatprep.subr.mxu0 0.0
        %534 = vmatpush1.msra.mxu0 0.0
        %535 = vmatprep.subr.mxu0 0.0
        %536 = vmatpush1.msra.mxu0 0.0
        %537 = vmatprep.subr.mxu0 0.0
        %538 = vmatpush1.msra.mxu0 0.0
        %539 = vmatprep.mubr.f32.mxu0 0.0
        %540 = vmatmul.mubr.f32.gmra.mrb[0].mxu0 %v470
        %v541 = vpop.f32.mrb[0].mxu0
        %v542 = vadd.f32 0.0, %v541
        %v543 = vpop.f32.mrb[0].mxu0
        %544 = vmatprep.mubr.f32.mxu0 0.0
        %545 = vmatmul.mubr.f32.gmra.mrb[0].mxu0 %v473
        %v546 = vpop.f32.mrb[0].mxu0
        %v547 = vadd.f32 0.0, %v546
        %v548 = vpop.f32.mrb[0].mxu0
        %549 = vdwg.mxu0
        %550 = vset.pattern.permute.xlu0 2
        %551 = vperm.xlu0 %550, %v345
        %v552 = vpop.permute.xlu0 %551
        %554 = vset.pattern.permute.xlu0 2
        %555 = vperm.xlu0 %554, %v346
        %v556 = vpop.permute.xlu0 %555
        %v558 = vmul.f32 %v542, %v552
        %v559 = vmul.f32 %v547, %v556
        %560 = vset.pattern.permute.xlu0 3
        %561 = vperm.xlu0 %560, %v345
        %v562 = vpop.permute.xlu0 %561
        %564 = vset.pattern.permute.xlu0 3
        %565 = vperm.xlu0 %564, %v346
        %v566 = vpop.permute.xlu0 %565
        %v568 = vadd.f32 %v558, %v562
        %v569 = vadd.f32 %v559, %v566
        %v570 = vmax.f32 %v568, 0.0
        %v571 = vmax.f32 %v569, 0.0
        %v573 = vsel %vm362, %v352, 0
        %v576 = vsel %vm362, %v353, 0
        %578 = vmatprep.subr.mxu0 0.0
        %579 = vmatpush1.msra.mxu0 %v344
        %580 = vmatprep.subr.mxu0 0.0
        %581 = vmatpush1.msra.mxu0 0.0
        %582 = vmatprep.subr.mxu0 0.0
        %583 = vmatpush1.msra.mxu0 0.0
        %584 = vmatprep.subr.mxu0 0.0
        %585 = vmatpush1.msra.mxu0 0.0
        %586 = vmatprep.subr.mxu0 0.0
        %587 = vmatpush1.msra.mxu0 0.0
        %588 = vmatprep.subr.mxu0 0.0
        %589 = vmatpush1.msra.mxu0 0.0
        %590 = vmatprep.subr.mxu0 0.0
        %591 = vmatpush1.msra.mxu0 0.0
        %592 = vmatprep.subr.mxu0 0.0
        %593 = vmatpush1.msra.mxu0 0.0
        %594 = vmatprep.subr.mxu0 0.0
        %595 = vmatpush1.msra.mxu0 0.0
        %596 = vmatprep.subr.mxu0 0.0
        %597 = vmatpush1.msra.mxu0 0.0
        %598 = vmatprep.subr.mxu0 0.0
        %599 = vmatpush1.msra.mxu0 0.0
        %600 = vmatprep.subr.mxu0 0.0
        %601 = vmatpush1.msra.mxu0 0.0
        %602 = vmatprep.subr.mxu0 0.0
        %603 = vmatpush1.msra.mxu0 0.0
        %604 = vmatprep.subr.mxu0 0.0
        %605 = vmatpush1.msra.mxu0 0.0
        %606 = vmatprep.subr.mxu0 0.0
        %607 = vmatpush1.msra.mxu0 0.0
        %608 = vmatprep.subr.mxu0 0.0
        %609 = vmatpush1.msra.mxu0 0.0
        %610 = vmatprep.subr.mxu0 0.0
        %611 = vmatpush1.msra.mxu0 0.0
        %612 = vmatprep.subr.mxu0 0.0
        %613 = vmatpush1.msra.mxu0 0.0
        %614 = vmatprep.subr.mxu0 0.0
        %615 = vmatpush1.msra.mxu0 0.0
        %616 = vmatprep.subr.mxu0 0.0
        %617 = vmatpush1.msra.mxu0 0.0
        %618 = vmatprep.subr.mxu0 0.0
        %619 = vmatpush1.msra.mxu0 0.0
        %620 = vmatprep.subr.mxu0 0.0
        %621 = vmatpush1.msra.mxu0 0.0
        %622 = vmatprep.subr.mxu0 0.0
        %623 = vmatpush1.msra.mxu0 0.0
        %624 = vmatprep.subr.mxu0 0.0
        %625 = vmatpush1.msra.mxu0 0.0
        %626 = vmatprep.subr.mxu0 0.0
        %627 = vmatpush1.msra.mxu0 0.0
        %628 = vmatprep.subr.mxu0 0.0
        %629 = vmatpush1.msra.mxu0 0.0
        %630 = vmatprep.subr.mxu0 0.0
        %631 = vmatpush1.msra.mxu0 0.0
        %632 = vmatprep.subr.mxu0 0.0
        %633 = vmatpush1.msra.mxu0 0.0
        %634 = vmatprep.subr.mxu0 0.0
        %635 = vmatpush1.msra.mxu0 0.0
        %636 = vmatprep.subr.mxu0 0.0
        %637 = vmatpush1.msra.mxu0 0.0
        %638 = vmatprep.subr.mxu0 0.0
        %639 = vmatpush1.msra.mxu0 0.0
        %640 = vmatprep.subr.mxu0 0.0
        %641 = vmatpush1.msra.mxu0 0.0
        %642 = vmatprep.mubr.f32.mxu0 0.0
        %643 = vmatmul.mubr.f32.gmra.mrb[0].mxu0 %v573
        %v644 = vpop.f32.mrb[0].mxu0
        %v645 = vadd.f32 0.0, %v644
        %v646 = vpop.f32.mrb[0].mxu0
        %647 = vmatprep.mubr.f32.mxu0 0.0
        %648 = vmatmul.mubr.f32.gmra.mrb[0].mxu0 %v576
        %v649 = vpop.f32.mrb[0].mxu0
        %v650 = vadd.f32 0.0, %v649
        %v651 = vpop.f32.mrb[0].mxu0
        %652 = vdwg.mxu0
        %653 = vset.pattern.permute.xlu0 4
        %654 = vperm.xlu0 %653, %v345
        %v655 = vpop.permute.xlu0 %654
        %657 = vset.pattern.permute.xlu0 4
        %658 = vperm.xlu0 %657, %v346
        %v659 = vpop.permute.xlu0 %658
        %v661 = vmul.f32 %v645, %v655
        %v662 = vmul.f32 %v650, %v659
        %664 = vset.pattern.permute.xlu0 0
        %665 = vperm.xlu0 %664, %v347
        %v666 = vpop.permute.xlu0 %665
        %669 = vset.pattern.permute.xlu0 0
        %670 = vperm.xlu0 %669, %v348
        %v671 = vpop.permute.xlu0 %670
        %v673 = vadd.f32 %v661, %v666
        %v674 = vadd.f32 %v662, %v671
        %v675 = vmax.f32 %v673, 0.0
        %v676 = vmax.f32 %v674, 0.0
        %v678 = vsel %vm468, %v360, 0
        %v681 = vsel %vm468, %v361, 0
        %683 = vmatprep.subr.mxu0 0.0
        %684 = vmatpush1.msra.mxu0 %v675
        %685 = vmatprep.subr.mxu0 0.0
        %686 = vmatpush1.msra.mxu0 %v676
        %687 = vmatprep.subr.mxu0 0.0
        %688 = vmatpush1.msra.mxu0 0.0
        %689 = vmatprep.subr.mxu0 0.0
        %690 = vmatpush1.msra.mxu0 0.0
        %691 = vmatprep.subr.mxu0 0.0
        %692 = vmatpush1.msra.mxu0 0.0
        %693 = vmatprep.subr.mxu0 0.0
        %694 = vmatpush1.msra.mxu0 0.0
        %695 = vmatprep.subr.mxu0 0.0
        %696 = vmatpush1.msra.mxu0 0.0
        %697 = vmatprep.subr.mxu0 0.0
        %698 = vmatpush1.msra.mxu0 0.0
        %699 = vmatprep.subr.mxu0 0.0
        %700 = vmatpush1.msra.mxu0 0.0
        %701 = vmatprep.subr.mxu0 0.0
        %702 = vmatpush1.msra.mxu0 0.0
        %703 = vmatprep.subr.mxu0 0.0
        %704 = vmatpush1.msra.mxu0 0.0
        %705 = vmatprep.subr.mxu0 0.0
        %706 = vmatpush1.msra.mxu0 0.0
        %707 = vmatprep.subr.mxu0 0.0
        %708 = vmatpush1.msra.mxu0 0.0
        %709 = vmatprep.subr.mxu0 0.0
        %710 = vmatpush1.msra.mxu0 0.0
        %711 = vmatprep.subr.mxu0 0.0
        %712 = vmatpush1.msra.mxu0 0.0
        %713 = vmatprep.subr.mxu0 0.0
        %714 = vmatpush1.msra.mxu0 0.0
        %715 = vmatprep.subr.mxu0 0.0
        %716 = vmatpush1.msra.mxu0 0.0
        %717 = vmatprep.subr.mxu0 0.0
        %718 = vmatpush1.msra.mxu0 0.0
        %719 = vmatprep.subr.mxu0 0.0
        %720 = vmatpush1.msra.mxu0 0.0
        %721 = vmatprep.subr.mxu0 0.0
        %722 = vmatpush1.msra.mxu0 0.0
        %723 = vmatprep.subr.mxu0 0.0
        %724 = vmatpush1.msra.mxu0 0.0
        %725 = vmatprep.subr.mxu0 0.0
        %726 = vmatpush1.msra.mxu0 0.0
        %727 = vmatprep.subr.mxu0 0.0
        %728 = vmatpush1.msra.mxu0 0.0
        %729 = vmatprep.subr.mxu0 0.0
        %730 = vmatpush1.msra.mxu0 0.0
        %731 = vmatprep.subr.mxu0 0.0
        %732 = vmatpush1.msra.mxu0 0.0
        %733 = vmatprep.subr.mxu0 0.0
        %734 = vmatpush1.msra.mxu0 0.0
        %735 = vmatprep.subr.mxu0 0.0
        %736 = vmatpush1.msra.mxu0 0.0
        %737 = vmatprep.subr.mxu0 0.0
        %738 = vmatpush1.msra.mxu0 0.0
        %739 = vmatprep.subr.mxu0 0.0
        %740 = vmatpush1.msra.mxu0 0.0
        %741 = vmatprep.subr.mxu0 0.0
        %742 = vmatpush1.msra.mxu0 0.0
        %743 = vmatprep.subr.mxu0 0.0
        %744 = vmatpush1.msra.mxu0 0.0
        %745 = vmatprep.subr.mxu0 0.0
        %746 = vmatpush1.msra.mxu0 0.0
        %747 = vmatprep.mubr.f32.mxu0 0.0
        %748 = vmatmul.mubr.f32.gmra.mrb[0].mxu0 %v678
        %v749 = vpop.f32.mrb[0].mxu0
        %v750 = vadd.f32 0.0, %v749
        %v751 = vpop.f32.mrb[0].mxu0
        %752 = vmatprep.mubr.f32.mxu0 0.0
        %753 = vmatmul.mubr.f32.gmra.mrb[0].mxu0 %v681
        %v754 = vpop.f32.mrb[0].mxu0
        %v755 = vadd.f32 0.0, %v754
        %v756 = vpop.f32.mrb[0].mxu0
        %757 = vdwg.mxu0
        %758 = vset.pattern.permute.xlu0 5
        %759 = vperm.xlu0 %758, %v345
        %v760 = vpop.permute.xlu0 %759
        %762 = vset.pattern.permute.xlu0 5
        %763 = vperm.xlu0 %762, %v346
        %v764 = vpop.permute.xlu0 %763
        %v766 = vmul.f32 %v750, %v760
        %v767 = vmul.f32 %v755, %v764
        %768 = vset.pattern.permute.xlu0 6
        %769 = vperm.xlu0 %768, %v345
        %v770 = vpop.permute.xlu0 %769
        %772 = vset.pattern.permute.xlu0 6
        %773 = vperm.xlu0 %772, %v346
        %v774 = vpop.permute.xlu0 %773
        %v776 = vadd.f32 %v766, %v770
        %v777 = vadd.f32 %v767, %v774
        %v778 = vmax.f32 %v776, 0.0
        %v779 = vmax.f32 %v777, 0.0
        %v781 = vsel %vm362, %v355, 0
        %v784 = vsel %vm362, %v356, 0
        %786 = vmatprep.subr.mxu0 0.0
        %787 = vmatpush1.msra.mxu0 %v344
        %788 = vmatprep.subr.mxu0 0.0
        %789 = vmatpush1.msra.mxu0 0.0
        %790 = vmatprep.subr.mxu0 0.0
        %791 = vmatpush1.msra.mxu0 0.0
        %792 = vmatprep.subr.mxu0 0.0
        %793 = vmatpush1.msra.mxu0 0.0
        %794 = vmatprep.subr.mxu0 0.0
        %795 = vmatpush1.msra.mxu0 0.0
        %796 = vmatprep.subr.mxu0 0.0
        %797 = vmatpush1.msra.mxu0 0.0
        %798 = vmatprep.subr.mxu0 0.0
        %799 = vmatpush1.msra.mxu0 0.0
        %800 = vmatprep.subr.mxu0 0.0
        %801 = vmatpush1.msra.mxu0 0.0
        %802 = vmatprep.subr.mxu0 0.0
        %803 = vmatpush1.msra.mxu0 0.0
        %804 = vmatprep.subr.mxu0 0.0
        %805 = vmatpush1.msra.mxu0 0.0
        %806 = vmatprep.subr.mxu0 0.0
        %807 = vmatpush1.msra.mxu0 0.0
        %808 = vmatprep.subr.mxu0 0.0
        %809 = vmatpush1.msra.mxu0 0.0
        %810 = vmatprep.subr.mxu0 0.0
        %811 = vmatpush1.msra.mxu0 0.0
        %812 = vmatprep.subr.mxu0 0.0
        %813 = vmatpush1.msra.mxu0 0.0
        %814 = vmatprep.subr.mxu0 0.0
        %815 = vmatpush1.msra.mxu0 0.0
        %816 = vmatprep.subr.mxu0 0.0
        %817 = vmatpush1.msra.mxu0 0.0
        %818 = vmatprep.subr.mxu0 0.0
        %819 = vmatpush1.msra.mxu0 0.0
        %820 = vmatprep.subr.mxu0 0.0
        %821 = vmatpush1.msra.mxu0 0.0
        %822 = vmatprep.subr.mxu0 0.0
        %823 = vmatpush1.msra.mxu0 0.0
        %824 = vmatprep.subr.mxu0 0.0
        %825 = vmatpush1.msra.mxu0 0.0
        %826 = vmatprep.subr.mxu0 0.0
        %827 = vmatpush1.msra.mxu0 0.0
        %828 = vmatprep.subr.mxu0 0.0
        %829 = vmatpush1.msra.mxu0 0.0
        %830 = vmatprep.subr.mxu0 0.0
        %831 = vmatpush1.msra.mxu0 0.0
        %832 = vmatprep.subr.mxu0 0.0
        %833 = vmatpush1.msra.mxu0 0.0
        %834 = vmatprep.subr.mxu0 0.0
        %835 = vmatpush1.msra.mxu0 0.0
        %836 = vmatprep.subr.mxu0 0.0
        %837 = vmatpush1.msra.mxu0 0.0
        %838 = vmatprep.subr.mxu0 0.0
        %839 = vmatpush1.msra.mxu0 0.0
        %840 = vmatprep.subr.mxu0 0.0
        %841 = vmatpush1.msra.mxu0 0.0
        %842 = vmatprep.subr.mxu0 0.0
        %843 = vmatpush1.msra.mxu0 0.0
        %844 = vmatprep.subr.mxu0 0.0
        %845 = vmatpush1.msra.mxu0 0.0
        %846 = vmatprep.subr.mxu0 0.0
        %847 = vmatpush1.msra.mxu0 0.0
        %848 = vmatprep.subr.mxu0 0.0
        %849 = vmatpush1.msra.mxu0 0.0
        %850 = vmatprep.mubr.f32.mxu0 0.0
        %851 = vmatmul.mubr.f32.gmra.mrb[0].mxu0 %v781
        %v852 = vpop.f32.mrb[0].mxu0
        %v853 = vadd.f32 0.0, %v852
        %v854 = vpop.f32.mrb[0].mxu0
        %855 = vmatprep.mubr.f32.mxu0 0.0
        %856 = vmatmul.mubr.f32.gmra.mrb[0].mxu0 %v784
        %v857 = vpop.f32.mrb[0].mxu0
        %v858 = vadd.f32 0.0, %v857
        %v859 = vpop.f32.mrb[0].mxu0
        %860 = vdwg.mxu0
        %861 = vset.pattern.permute.xlu0 7
        %862 = vperm.xlu0 %861, %v345
        %v863 = vpop.permute.xlu0 %862
        %865 = vset.pattern.permute.xlu0 7
        %866 = vperm.xlu0 %865, %v346
        %v867 = vpop.permute.xlu0 %866
        %v869 = vmul.f32 %v853, %v863
        %v870 = vmul.f32 %v858, %v867
        %871 = vset.pattern.permute.xlu0 1
        %872 = vperm.xlu0 %871, %v347
        %v873 = vpop.permute.xlu0 %872
        %875 = vset.pattern.permute.xlu0 1
        %876 = vperm.xlu0 %875, %v348
        %v877 = vpop.permute.xlu0 %876
        %v879 = vadd.f32 %v869, %v873
        %v880 = vadd.f32 %v870, %v877
        %v881 = vmax.f32 %v879, 0.0
        %v882 = vmax.f32 %v880, 0.0
        %883 = vst [vmem:[%s316] sm:$0xff] %v570
        %884 = vst [vmem:[%s316 + $0x8] sm:$0xff] %v571
        %885 = vst [vmem:[%s323] sm:$0xff] %v778
        %886 = vst [vmem:[%s323 + $0x8] sm:$0xff] %v779
        %887 = vst [vmem:[%s330] sm:$0xff] %v881
        %888 = vst [vmem:[%s330 + $0x8] sm:$0xff] %v882
        %s889 = sand.u32 %s164, 1
        %s890 = scalar_lea.sflag [#allocation3], %s889
        %s891 = sand.u32 %s164, 1
        %s892 = smul.addr %s891, 16
        %s893 = scalar_lea.vmem [#allocation2], %s892
        %s894 = sand.u32 %s25, 1
        %s895 = scalar_lea.sflag [#allocation5], %s894
        %s896 = sand.u32 %s192, 1
        %s897 = smul.addr %s896, 16
        %s898 = scalar_lea.vmem [#allocation4], %s897
        %s899 = sand.u32 %s25, 1
        %s900 = scalar_lea.sflag [#allocation5], %s899
        %s901 = sand.u32 %s220, 1
        %s902 = smul.addr %s901, 16
        %s903 = scalar_lea.vmem [#allocation6], %s902
        // Predicated region
        $region41: #{tpu_custom_call.1} parent=39 // pred_check
          %p904 = pneg %p174
        $region42: #{tpu_custom_call.1} parent=39 // pred_check_branch
          %906 = sbr.rel (%p904) target = $region44
        $region43: #{tpu_custom_call.1} parent=39 // pred_region
          %s908 = ssub.s32 256, 256
          %909 = vsyncadd %s890, %s908
          %s910 = smul.addr %s29, 4
          %s911 = sadd.s32 %s30, %s910
          %s912 = smul.addr %s911, 128
          %s913 = scalar_lea.hbm %s5, %s912
          %s914 = sshll.u32 %s893, 4
          %s915 = int_to_ptr.vmem [resolvable:$true] %s914
          %920 = dma.vmem_to_hbm [thread:$0]  %s915, 256, %s913, %s890, 128, 256, 8
        $region44: #{tpu_custom_call.1} parent=39 // pred_fallthru
          _
        // Predicated region
        $region45: #{tpu_custom_call.1} parent=39 // pred_check
          %p921 = pneg %p202
        $region46: #{tpu_custom_call.1} parent=39 // pred_check_branch
          %923 = sbr.rel (%p921) target = $region48
        $region47: #{tpu_custom_call.1} parent=39 // pred_region
          %s925 = ssub.s32 256, 256
          %926 = vsyncadd %s895, %s925
          %s927 = smul.addr %s29, 4
          %s928 = sadd.s32 %s30, %s927
          %s929 = smul.addr %s928, 128
          %s930 = scalar_lea.hbm %s6, %s929
          %s931 = sshll.u32 %s898, 4
          %s932 = int_to_ptr.vmem [resolvable:$true] %s931
          %937 = dma.vmem_to_hbm [thread:$0]  %s932, 256, %s930, %s895, 128, 256, 8
        $region48: #{tpu_custom_call.1} parent=39 // pred_fallthru
          _
        // Predicated region
        $region49: #{tpu_custom_call.1} parent=39 // pred_check
          %p938 = pneg %p230
        $region50: #{tpu_custom_call.1} parent=39 // pred_check_branch
          %940 = sbr.rel (%p938) target = $region52
        $region51: #{tpu_custom_call.1} parent=39 // pred_region
          %s942 = ssub.s32 256, 256
          %943 = vsyncadd %s900, %s942
          %s944 = smul.addr %s29, 4
          %s945 = sadd.s32 %s30, %s944
          %s946 = smul.addr %s945, 128
          %s947 = scalar_lea.hbm %s7, %s946
          %s948 = sshll.u32 %s903, 4
          %s949 = int_to_ptr.vmem [resolvable:$true] %s948
          %954 = dma.vmem_to_hbm [thread:$0]  %s949, 256, %s947, %s900, 128, 256, 8
        $region52: #{tpu_custom_call.1} parent=39 // pred_fallthru
          _
      $region40: #{tpu_custom_call.1} parent=5 // pred_fallthru
        _
      %p955 = scmp.le.s32.totalorder 2, %s20
      // Predicated region
      $region53: #{tpu_custom_call.1} parent=5 // pred_check
        %p956 = pneg %p955
      $region54: #{tpu_custom_call.1} parent=5 // pred_check_branch
        %958 = sbr.rel (%p956) target = $region56
      $region55: #{tpu_custom_call.1} parent=5 // pred_region
        %s959 = ssub.s32 %s20, 2
        // Predicated region
        $region57: #{tpu_custom_call.1} parent=55 // pred_check
          %p960 = pneg %p180
        $region58: #{tpu_custom_call.1} parent=55 // pred_check_branch
          %962 = sbr.rel (%p960) target = $region60
        $region59: #{tpu_custom_call.1} parent=55 // pred_region
          %s963 = sand.u32 %s165, 1
          %s964 = scalar_lea.sflag [#allocation3], %s963
          %s965 = sand.u32 %s165, 1
          %s966 = smul.addr %s965, 16
          %s967 = scalar_lea.vmem [#allocation2], %s966
          %968 = dma.done %s964, 256
        $region60: #{tpu_custom_call.1} parent=55 // pred_fallthru
          _
        // Predicated region
        $region61: #{tpu_custom_call.1} parent=55 // pred_check
          %p969 = pneg %p208
        $region62: #{tpu_custom_call.1} parent=55 // pred_check_branch
          %971 = sbr.rel (%p969) target = $region64
        $region63: #{tpu_custom_call.1} parent=55 // pred_region
          %s972 = sand.u32 %s26, 1
          %s973 = scalar_lea.sflag [#allocation5], %s972
          %s974 = sand.u32 %s193, 1
          %s975 = smul.addr %s974, 16
          %s976 = scalar_lea.vmem [#allocation4], %s975
          %977 = dma.done %s973, 256
        $region64: #{tpu_custom_call.1} parent=55 // pred_fallthru
          _
        // Predicated region
        $region65: #{tpu_custom_call.1} parent=55 // pred_check
          %p978 = pneg %p236
        $region66: #{tpu_custom_call.1} parent=55 // pred_check_branch
          %980 = sbr.rel (%p978) target = $region68
        $region67: #{tpu_custom_call.1} parent=55 // pred_region
          %s981 = sand.u32 %s26, 1
          %s982 = scalar_lea.sflag [#allocation5], %s981
          %s983 = sand.u32 %s221, 1
          %s984 = smul.addr %s983, 16
          %s985 = scalar_lea.vmem [#allocation6], %s984
          %986 = dma.done %s982, 256
        $region68: #{tpu_custom_call.1} parent=55 // pred_fallthru
          _
      $region56: #{tpu_custom_call.1} parent=5 // pred_fallthru
        _
    $region6: #{tpu_custom_call.1} parent=1 // loop_footer
      %s24 = sadd.s32 1, %s20
    $region7: #{tpu_custom_call.1} parent=1 // loop_footer_branch
      %19 = sbr.rel target = $region3
    $region8: #{tpu_custom_call.1} parent=1 // loop_exit
      _
    %987 = vsyncpa [#allocation3], 1
    %s988 = scalar_lea.sflag [#allocation3], 1
    %989 = vsyncpa %s988, 1
    %990 = vsyncpa [#allocation5], 1
    %s991 = scalar_lea.sflag [#allocation5], 1
    %992 = vsyncpa %s991, 1

// kernel: tpu_custom_call.1
$region0: #{tpu_custom_call.1}
  #allocation0 [shape = 'u32[]', space=smem, size = 0x4, offset = 0x4, fixed_abs, tag = 'smem constant byte address 0x4 - core index']
  #allocation1 [shape = 'u32[144,128]{1,0:T(1,128)}', space=vmem, size = 0x12000, scoped, tag = 'internal scratch']
  %s0 = inlined_call_operand.vmem [shape: f32[2,8,256], index: 0, kind: input, shape index: {}]
  %s1 = inlined_call_operand.vmem [shape: f32[3,16,8], index: 1, kind: input, shape index: {}]
  %s2 = inlined_call_operand.vmem [shape: f32[2,16,16], index: 2, kind: input, shape index: {}]
  %s3 = inlined_call_operand.vmem [shape: f32[16,8], index: 3, kind: input, shape index: {}]
  %s4 = inlined_call_operand.vmem [shape: f32[2,16,2], index: 4, kind: input, shape index: {}]
  %s5 = inlined_call_operand.hbm [shape: f32[2,16,256], index: 5, kind: output, shape index: {0}]
  %s6 = inlined_call_operand.hbm [shape: f32[2,16,256], index: 6, kind: output, shape index: {1}]
  %s7 = inlined_call_operand.hbm [shape: f32[2,16,256], index: 7, kind: output, shape index: {2}]
  %8 = xla_tuple %s5, %s6, %s7
  %s9 = sld [smem:[#allocation0]]
  $region69: #{tpu_custom_call.1} parent=0
    _
  %s11 = ssub.s32 1, %s9
  %s12 = scalar_select 0, %s11, %s9
  $region1: #{tpu_custom_call.1} parent=0
    #allocation2 [shape = 'u8[16384]{0}', space=vmem, size = 0x4000, scoped, tag = 'output window, operand 0']
    #allocation3 [shape = 's32[2]{0}', space=sflag, size = 0x8, scoped, tag = 'scoped memory for tpu_custom_call.1']
    #allocation4 [shape = 'u8[16384]{0}', space=vmem, size = 0x4000, scoped, tag = 'output window, operand 1']
    #allocation5 [shape = 's32[2]{0}', space=sflag, size = 0x8, scoped, tag = 'scoped memory for tpu_custom_call.1']
    #allocation6 [shape = 'u8[16384]{0}', space=vmem, size = 0x4000, scoped, tag = 'output window, operand 2']
    %13 = vsyncpa [#allocation3], 0
    %s14 = scalar_lea.sflag [#allocation3], 1
    %15 = vsyncpa %s14, 0
    %16 = vsyncpa [#allocation5], 0
    %s17 = scalar_lea.sflag [#allocation5], 1
    %18 = vsyncpa %s17, 0
    loop: start=0, step=1, limit=6
    $region2: #{tpu_custom_call.1} parent=1 // loop_pre_header
      _
    $region3: #{tpu_custom_call.1} parent=1 // loop_header
      %s20 = sphi 0, %s24
      %p21 = scmp.ge.s32.totalorder %s20, 6
      %s27 = sphi 0, %s39
      %s28 = sphi 0, %s35
      %s29 = sphi 0, %s27
      %s30 = sphi 0, %s28
      %s31 = sphi 0, %s29
      %s32 = sphi 0, %s30
      %s44 = sphi 0, %s46
      %s47 = sphi 0, %s44
      %s48 = sphi 0, %s47
      %s64 = sphi 0, %s48
      %s68 = sphi 0, %s68
      %s70 = sphi 0, %s68
      %s71 = sphi 0, %s70
      %s85 = sphi 0, %s71
      %s89 = sphi 0, %s89
      %s91 = sphi 0, %s89
      %s92 = sphi 0, %s91
      %s106 = sphi 0, %s92
      %s110 = sphi 0, %s110
      %s112 = sphi 0, %s110
      %s113 = sphi 0, %s112
      %s127 = sphi 0, %s113
      %s133 = sphi 0, %s135
      %s136 = sphi 0, %s133
      %s137 = sphi 0, %s136
      %s153 = sphi 0, %s137
      %s161 = sphi 0, %s163
      %s164 = sphi 0, %s161
      %s165 = sphi 0, %s164
      %s181 = sphi 0, %s165
      %s189 = sphi 0, %s191
      %s192 = sphi 0, %s189
      %s193 = sphi 0, %s192
      %s209 = sphi 0, %s193
      %s217 = sphi 0, %s219
      %s220 = sphi 0, %s217
      %s221 = sphi 0, %s220
      %s237 = sphi 0, %s221
    $region4: #{tpu_custom_call.1} parent=1 // loop_header_branch
      %23 = sbr.rel (%p21) target = $region8
    $region5: #{tpu_custom_call.1} parent=1 // loop_body
      %s25 = ssub.s32 %s20, 1
      %s26 = ssub.s32 %s20, 2
      %s33 = sadd.s32 1, %s28
      %p34 = scmp.ge.s32.totalorder %s33, 2
      %s35 = scalar_select %p34, 0, %s33
      %s36 = sadd.s32 1, %s27
      %s37 = scalar_select %p34, %s36, %s27
      %p38 = scmp.ge.s32.totalorder %s37, 2
      %s39 = scalar_select %p38, 0, %s37
      %s40 = ssub.s32 %s27, %s39
      %s41 = ssub.s32 %s28, %s35
      %s42 = sor.u32 %s40, %s41
      %p43 = scmp.eq.s32.totalorder %s42, 0
      %s45 = sadd.s32 %s44, 1
      %s46 = scalar_select %p43, %s44, %s45
      %p49 = pneg %p43
      %p50 = scmp.eq.s32.totalorder %s20, 3
      %p51 = por %p49, %p50
      %p52 = scmp.ne.s32.totalorder %s44, %s47
      %p53 = scmp.eq.s32.totalorder %s20, 0
      %p54 = por %p52, %p53
      %p55 = scmp.ne.s32.totalorder %s44, %s47
      %p56 = scmp.eq.s32.totalorder %s25, 3
      %p57 = por %p55, %p56
      %p58 = scmp.ne.s32.totalorder %s47, %s48
      %p59 = scmp.eq.s32.totalorder %s25, 0
      %p60 = por %p58, %p59
      %p61 = scmp.ne.s32.totalorder %s47, %s48
      %p62 = scmp.eq.s32.totalorder %s26, 3
      %p63 = por %p61, %p62
      %p65 = scmp.ne.s32.totalorder %s48, %s64
      %p66 = scmp.eq.s32.totalorder %s26, 0
      %p67 = por %p65, %p66
      %s69 = sadd.s32 %s68, 1
      %p72 = scmp.eq.s32.totalorder %s20, 3
      %p73 = scmp.ne.s32.totalorder %s68, %s70
      %p74 = scmp.eq.s32.totalorder %s20, 0
      %p75 = por %p73, %p74
      %p76 = scmp.ne.s32.totalorder %s68, %s70
      %p77 = scmp.eq.s32.totalorder %s25, 3
      %p78 = por %p76, %p77
      %p79 = scmp.ne.s32.totalorder %s70, %s71
      %p80 = scmp.eq.s32.totalorder %s25, 0
      %p81 = por %p79, %p80
      %p82 = scmp.ne.s32.totalorder %s70, %s71
      %p83 = scmp.eq.s32.totalorder %s26, 3
      %p84 = por %p82, %p83
      %p86 = scmp.ne.s32.totalorder %s71, %s85
      %p87 = scmp.eq.s32.totalorder %s26, 0
      %p88 = por %p86, %p87
      %s90 = sadd.s32 %s89, 1
      %p93 = scmp.eq.s32.totalorder %s20, 3
      %p94 = scmp.ne.s32.totalorder %s89, %s91
      %p95 = scmp.eq.s32.totalorder %s20, 0
      %p96 = por %p94, %p95
      %p97 = scmp.ne.s32.totalorder %s89, %s91
      %p98 = scmp.eq.s32.totalorder %s25, 3
      %p99 = por %p97, %p98
      %p100 = scmp.ne.s32.totalorder %s91, %s92
      %p101 = scmp.eq.s32.totalorder %s25, 0
      %p102 = por %p100, %p101
      %p103 = scmp.ne.s32.totalorder %s91, %s92
      %p104 = scmp.eq.s32.totalorder %s26, 3
      %p105 = por %p103, %p104
      %p107 = scmp.ne.s32.totalorder %s92, %s106
      %p108 = scmp.eq.s32.totalorder %s26, 0
      %p109 = por %p107, %p108
      %s111 = sadd.s32 %s110, 1
      %p114 = scmp.eq.s32.totalorder %s20, 3
      %p115 = scmp.ne.s32.totalorder %s110, %s112
      %p116 = scmp.eq.s32.totalorder %s20, 0
      %p117 = por %p115, %p116
      %p118 = scmp.ne.s32.totalorder %s110, %s112
      %p119 = scmp.eq.s32.totalorder %s25, 3
      %p120 = por %p118, %p119
      %p121 = scmp.ne.s32.totalorder %s112, %s113
      %p122 = scmp.eq.s32.totalorder %s25, 0
      %p123 = por %p121, %p122
      %p124 = scmp.ne.s32.totalorder %s112, %s113
      %p125 = scmp.eq.s32.totalorder %s26, 3
      %p126 = por %p124, %p125
      %p128 = scmp.ne.s32.totalorder %s113, %s127
      %p129 = scmp.eq.s32.totalorder %s26, 0
      %p130 = por %p128, %p129
      %s131 = ssub.s32 %s27, %s39
      %p132 = scmp.eq.s32.totalorder %s131, 0
      %s134 = sadd.s32 %s133, 1
      %s135 = scalar_select %p132, %s133, %s134
      %p138 = pneg %p132
      %p139 = scmp.eq.s32.totalorder %s20, 3
      %p140 = por %p138, %p139
      %p141 = scmp.ne.s32.totalorder %s133, %s136
      %p142 = scmp.eq.s32.totalorder %s20, 0
      %p143 = por %p141, %p142
      %p144 = scmp.ne.s32.totalorder %s133, %s136
      %p145 = scmp.eq.s32.totalorder %s25, 3
      %p146 = por %p144, %p145
      %p147 = scmp.ne.s32.totalorder %s136, %s137
      %p148 = scmp.eq.s32.totalorder %s25, 0
      %p149 = por %p147, %p148
      %p150 = scmp.ne.s32.totalorder %s136, %s137
      %p151 = scmp.eq.s32.totalorder %s26, 3
      %p152 = por %p150, %p151
      %p154 = scmp.ne.s32.totalorder %s137, %s153
      %p155 = scmp.eq.s32.totalorder %s26, 0
      %p156 = por %p154, %p155
      %s157 = ssub.s32 %s27, %s39
      %s158 = ssub.s32 %s28, %s35
      %s159 = sor.u32 %s157, %s158
      %p160 = scmp.eq.s32.totalorder %s159, 0
      %s162 = sadd.s32 %s161, 1
      %s163 = scalar_select %p160, %s161, %s162
      %p166 = pneg %p160
      %p167 = scmp.eq.s32.totalorder %s20, 3
      %p168 = por %p166, %p167
      %p169 = scmp.ne.s32.totalorder %s161, %s164
      %p170 = scmp.eq.s32.totalorder %s20, 0
      %p171 = por %p169, %p170
      %p172 = scmp.ne.s32.totalorder %s161, %s164
      %p173 = scmp.eq.s32.totalorder %s25, 3
      %p174 = por %p172, %p173
      %p175 = scmp.ne.s32.totalorder %s164, %s165
      %p176 = scmp.eq.s32.totalorder %s25, 0
      %p177 = por %p175, %p176
      %p178 = scmp.ne.s32.totalorder %s164, %s165
      %p179 = scmp.eq.s32.totalorder %s26, 3
      %p180 = por %p178, %p179
      %p182 = scmp.ne.s32.totalorder %s165, %s181
      %p183 = scmp.eq.s32.totalorder %s26, 0
      %p184 = por %p182, %p183
      %s185 = ssub.s32 %s27, %s39
      %s186 = ssub.s32 %s28, %s35
      %s187 = sor.u32 %s185, %s186
      %p188 = scmp.eq.s32.totalorder %s187, 0
      %s190 = sadd.s32 %s189, 1
      %s191 = scalar_select %p188, %s189, %s190
      %p194 = pneg %p188
      %p195 = scmp.eq.s32.totalorder %s20, 3
      %p196 = por %p194, %p195
      %p197 = scmp.ne.s32.totalorder %s189, %s192
      %p198 = scmp.eq.s32.totalorder %s20, 0
      %p199 = por %p197, %p198
      %p200 = scmp.ne.s32.totalorder %s189, %s192
      %p201 = scmp.eq.s32.totalorder %s25, 3
      %p202 = por %p200, %p201
      %p203 = scmp.ne.s32.totalorder %s192, %s193
      %p204 = scmp.eq.s32.totalorder %s25, 0
      %p205 = por %p203, %p204
      %p206 = scmp.ne.s32.totalorder %s192, %s193
      %p207 = scmp.eq.s32.totalorder %s26, 3
      %p208 = por %p206, %p207
      %p210 = scmp.ne.s32.totalorder %s193, %s209
      %p211 = scmp.eq.s32.totalorder %s26, 0
      %p212 = por %p210, %p211
      %s213 = ssub.s32 %s27, %s39
      %s214 = ssub.s32 %s28, %s35
      %s215 = sor.u32 %s213, %s214
      %p216 = scmp.eq.s32.totalorder %s215, 0
      %s218 = sadd.s32 %s217, 1
      %s219 = scalar_select %p216, %s217, %s218
      %p222 = pneg %p216
      %p223 = scmp.eq.s32.totalorder %s20, 3
      %p224 = por %p222, %p223
      %p225 = scmp.ne.s32.totalorder %s217, %s220
      %p226 = scmp.eq.s32.totalorder %s20, 0
      %p227 = por %p225, %p226
      %p228 = scmp.ne.s32.totalorder %s217, %s220
      %p229 = scmp.eq.s32.totalorder %s25, 3
      %p230 = por %p228, %p229
      %p231 = scmp.ne.s32.totalorder %s220, %s221
      %p232 = scmp.eq.s32.totalorder %s25, 0
      %p233 = por %p231, %p232
      %p234 = scmp.ne.s32.totalorder %s220, %s221
      %p235 = scmp.eq.s32.totalorder %s26, 3
      %p236 = por %p234, %p235
      %p238 = scmp.ne.s32.totalorder %s221, %s237
      %p239 = scmp.eq.s32.totalorder %s26, 0
      %p240 = por %p238, %p239
      %p241 = scmp.le.s32.totalorder 1, %s20
      %p242 = scmp.lt.s32.totalorder %s20, 5
      %p243 = pnand %p241, %p242
      %p244 = pneg %p243
      // Predicated region
      $region9: #{tpu_custom_call.1} parent=5 // pred_check
        _
      $region10: #{tpu_custom_call.1} parent=5 // pred_check_branch
        %246 = sbr.rel (%p243) target = $region12
      $region11: #{tpu_custom_call.1} parent=5 // pred_region
        %s247 = ssub.s32 %s20, 1
        // Predicated region
        $region13: #{tpu_custom_call.1} parent=11 // pred_check
          %p248 = pneg %p81
        $region14: #{tpu_custom_call.1} parent=11 // pred_check_branch
          %250 = sbr.rel (%p248) target = $region16
        $region15: #{tpu_custom_call.1} parent=11 // pred_region
          _
        $region16: #{tpu_custom_call.1} parent=11 // pred_fallthru
          _
        // Predicated region
        $region17: #{tpu_custom_call.1} parent=11 // pred_check
          %p251 = pneg %p102
        $region18: #{tpu_custom_call.1} parent=11 // pred_check_branch
          %253 = sbr.rel (%p251) target = $region20
        $region19: #{tpu_custom_call.1} parent=11 // pred_region
          _
        $region20: #{tpu_custom_call.1} parent=11 // pred_fallthru
          _
        // Predicated region
        $region21: #{tpu_custom_call.1} parent=11 // pred_check
          %p254 = pneg %p123
        $region22: #{tpu_custom_call.1} parent=11 // pred_check_branch
          %256 = sbr.rel (%p254) target = $region24
        $region23: #{tpu_custom_call.1} parent=11 // pred_region
          _
        $region24: #{tpu_custom_call.1} parent=11 // pred_fallthru
          _
      $region12: #{tpu_custom_call.1} parent=5 // pred_fallthru
        _
      %p257 = scmp.lt.s32.totalorder %s20, 4
      // Predicated region
      $region25: #{tpu_custom_call.1} parent=5 // pred_check
        %p258 = pneg %p257
      $region26: #{tpu_custom_call.1} parent=5 // pred_check_branch
        %260 = sbr.rel (%p258) target = $region28
      $region27: #{tpu_custom_call.1} parent=5 // pred_region
        // Predicated region
        $region29: #{tpu_custom_call.1} parent=27 // pred_check
          %p261 = pneg %p54
        $region30: #{tpu_custom_call.1} parent=27 // pred_check_branch
          %263 = sbr.rel (%p261) target = $region32
        $region31: #{tpu_custom_call.1} parent=27 // pred_region
          %p264 = scmp.lt.s32.totalorder %s27, 1
          %s265 = scalar_select %p264, %s27, 1
          %p266 = scmp.lt.s32.totalorder %s28, 1
          %s267 = scalar_select %p266, %s28, 1
          %s268 = smul.addr %s265, 2
          %s269 = sadd.s32 %s267, %s268
          %s270 = smul.addr %s269, 8
          %s271 = scalar_lea.vmem %s0, %s270
        $region32: #{tpu_custom_call.1} parent=27 // pred_fallthru
          _
        // Predicated region
        $region33: #{tpu_custom_call.1} parent=27 // pred_check
          %p272 = pneg %p143
        $region34: #{tpu_custom_call.1} parent=27 // pred_check_branch
          %274 = sbr.rel (%p272) target = $region36
        $region35: #{tpu_custom_call.1} parent=27 // pred_region
          %p275 = scmp.lt.s32.totalorder %s27, 1
          %s276 = scalar_select %p275, %s27, 1
          %s277 = smul.addr %s276, 2
          %s278 = smul.addr %s277, 8
          %s279 = scalar_lea.vmem %s4, %s278
        $region36: #{tpu_custom_call.1} parent=27 // pred_fallthru
          _
      $region28: #{tpu_custom_call.1} parent=5 // pred_fallthru
        _
      %p280 = scmp.le.s32.totalorder 1, %s20
      %p281 = scmp.lt.s32.totalorder %s20, 5
      %p282 = pnand %p280, %p281
      %p283 = pneg %p282
      // Predicated region
      $region37: #{tpu_custom_call.1} parent=5 // pred_check
        _
      $region38: #{tpu_custom_call.1} parent=5 // pred_check_branch
        %285 = sbr.rel (%p282) target = $region40
      $region39: #{tpu_custom_call.1} parent=5 // pred_region
        %s286 = ssub.s32 %s20, 1
        %p287 = scmp.lt.s32.totalorder %s29, 1
        %s288 = scalar_select %p287, %s29, 1
        %p289 = scmp.lt.s32.totalorder %s30, 1
        %s290 = scalar_select %p289, %s30, 1
        %s291 = smul.addr %s288, 2
        %s292 = sadd.s32 %s290, %s291
        %s293 = smul.addr %s292, 8
        %s294 = scalar_lea.vmem %s0, %s293
        %p295 = pneg %p60
        %p296 = pneg %p57
        %p297 = pneg %p81
        %p298 = pneg %p78
        %p299 = pneg %p102
        %p300 = pneg %p99
        %p301 = pneg %p123
        %p302 = pneg %p120
        %p303 = scmp.lt.s32.totalorder %s29, 1
        %s304 = scalar_select %p303, %s29, 1
        %s305 = smul.addr %s304, 2
        %s306 = smul.addr %s305, 8
        %s307 = scalar_lea.vmem %s4, %s306
        %p308 = pneg %p149
        %p309 = pneg %p146
        %p310 = pneg %p177
        %p311 = pneg %p174
        %s312 = sand.u32 %s164, 1
        %s313 = scalar_lea.sflag [#allocation3], %s312
        %s314 = sand.u32 %s164, 1
        %s315 = smul.addr %s314, 16
        %s316 = scalar_lea.vmem [#allocation2], %s315
        %p317 = pneg %p205
        %p318 = pneg %p202
        %s319 = sand.u32 %s25, 1
        %s320 = scalar_lea.sflag [#allocation5], %s319
        %s321 = sand.u32 %s192, 1
        %s322 = smul.addr %s321, 16
        %s323 = scalar_lea.vmem [#allocation4], %s322
        %p324 = pneg %p233
        %p325 = pneg %p230
        %s326 = sand.u32 %s25, 1
        %s327 = scalar_lea.sflag [#allocation5], %s326
        %s328 = sand.u32 %s220, 1
        %s329 = smul.addr %s328, 16
        %s330 = scalar_lea.vmem [#allocation6], %s329
        %p331 = scmp.lt.s32.totalorder %s29, 1
        %s332 = scalar_select %p331, %s29, 1
        %p333 = scmp.lt.s32.totalorder %s30, 1
        %s334 = scalar_select %p333, %s30, 1
        %s335 = smul.addr %s332, 2
        %s336 = sadd.s32 %s334, %s335
        %s337 = smul.addr %s336, 8
        %s338 = scalar_lea.vmem %s0, %s337
        %p339 = scmp.lt.s32.totalorder %s29, 1
        %s340 = scalar_select %p339, %s29, 1
        %s341 = smul.addr %s340, 2
        %s342 = smul.addr %s341, 8
        %s343 = scalar_lea.vmem %s4, %s342
        %v344 = vld [vmem:[%s338] sm:$0xff]
        %v345 = vld [vmem:[%s3] sm:$0xff]
        %v346 = vld [vmem:[%s3 + $0x8] sm:$0xff]
        %v347 = vld [vmem:[%s343] sm:$0xff]
        %v348 = vld [vmem:[%s343 + $0x8] sm:$0xff]
        %v349 = vld [vmem:[%s1] sm:$0xff]
        %v350 = vld [vmem:[%s1 + $0x8] sm:$0xff]
        %s351 = scalar_lea.vmem %s1, 16
        %v352 = vld [vmem:[%s351] sm:$0xff]
        %v353 = vld [vmem:[%s351 + $0x8] sm:$0xff]
        %s354 = scalar_lea.vmem %s1, 32
        %v355 = vld [vmem:[%s354] sm:$0xff]
        %v356 = vld [vmem:[%s354 + $0x8] sm:$0xff]
        %v357 = vld [vmem:[%s2] sm:$0xff]
        %v358 = vld [vmem:[%s2 + $0x8] sm:$0xff]
        %s359 = scalar_lea.vmem %s2, 16
        %v360 = vld [vmem:[%s359] sm:$0xff]
        %v361 = vld [vmem:[%s359 + $0x8] sm:$0xff]
        %vm362 = vcmask 64512
        %v364 = vsel %vm362, %v349, 0
        %v367 = vsel %vm362, %v350, 0
        %369 = vmatprep.subr.mxu0 0.0
        %370 = vmatpush1.msra.mxu0 %v344
        %371 = vmatprep.subr.mxu0 0.0
        %372 = vmatpush1.msra.mxu0 0.0
        %373 = vmatprep.subr.mxu0 0.0
        %374 = vmatpush1.msra.mxu0 0.0
        %375 = vmatprep.subr.mxu0 0.0
        %376 = vmatpush1.msra.mxu0 0.0
        %377 = vmatprep.subr.mxu0 0.0
        %378 = vmatpush1.msra.mxu0 0.0
        %379 = vmatprep.subr.mxu0 0.0
        %380 = vmatpush1.msra.mxu0 0.0
        %381 = vmatprep.subr.mxu0 0.0
        %382 = vmatpush1.msra.mxu0 0.0
        %383 = vmatprep.subr.mxu0 0.0
        %384 = vmatpush1.msra.mxu0 0.0
        %385 = vmatprep.subr.mxu0 0.0
        %386 = vmatpush1.msra.mxu0 0.0
        %387 = vmatprep.subr.mxu0 0.0
        %388 = vmatpush1.msra.mxu0 0.0
        %389 = vmatprep.subr.mxu0 0.0
        %390 = vmatpush1.msra.mxu0 0.0
        %391 = vmatprep.subr.mxu0 0.0
        %392 = vmatpush1.msra.mxu0 0.0
        %393 = vmatprep.subr.mxu0 0.0
        %394 = vmatpush1.msra.mxu0 0.0
        %395 = vmatprep.subr.mxu0 0.0
        %396 = vmatpush1.msra.mxu0 0.0
        %397 = vmatprep.subr.mxu0 0.0
        %398 = vmatpush1.msra.mxu0 0.0
        %399 = vmatprep.subr.mxu0 0.0
        %400 = vmatpush1.msra.mxu0 0.0
        %401 = vmatprep.subr.mxu0 0.0
        %402 = vmatpush1.msra.mxu0 0.0
        %403 = vmatprep.subr.mxu0 0.0
        %404 = vmatpush1.msra.mxu0 0.0
        %405 = vmatprep.subr.mxu0 0.0
        %406 = vmatpush1.msra.mxu0 0.0
        %407 = vmatprep.subr.mxu0 0.0
        %408 = vmatpush1.msra.mxu0 0.0
        %409 = vmatprep.subr.mxu0 0.0
        %410 = vmatpush1.msra.mxu0 0.0
        %411 = vmatprep.subr.mxu0 0.0
        %412 = vmatpush1.msra.mxu0 0.0
        %413 = vmatprep.subr.mxu0 0.0
        %414 = vmatpush1.msra.mxu0 0.0
        %415 = vmatprep.subr.mxu0 0.0
        %416 = vmatpush1.msra.mxu0 0.0
        %417 = vmatprep.subr.mxu0 0.0
        %418 = vmatpush1.msra.mxu0 0.0
        %419 = vmatprep.subr.mxu0 0.0
        %420 = vmatpush1.msra.mxu0 0.0
        %421 = vmatprep.subr.mxu0 0.0
        %422 = vmatpush1.msra.mxu0 0.0
        %423 = vmatprep.subr.mxu0 0.0
        %424 = vmatpush1.msra.mxu0 0.0
        %425 = vmatprep.subr.mxu0 0.0
        %426 = vmatpush1.msra.mxu0 0.0
        %427 = vmatprep.subr.mxu0 0.0
        %428 = vmatpush1.msra.mxu0 0.0
        %429 = vmatprep.subr.mxu0 0.0
        %430 = vmatpush1.msra.mxu0 0.0
        %431 = vmatprep.subr.mxu0 0.0
        %432 = vmatpush1.msra.mxu0 0.0
        %433 = vmatprep.mubr.f32.mxu0 0.0
        %434 = vmatmul.mubr.f32.gmra.mrb[0].mxu0 %v364
        %v435 = vpop.f32.mrb[0].mxu0
        %v436 = vadd.f32 0.0, %v435
        %v437 = vpop.f32.mrb[0].mxu0
        %438 = vmatprep.mubr.f32.mxu0 0.0
        %439 = vmatmul.mubr.f32.gmra.mrb[0].mxu0 %v367
        %v440 = vpop.f32.mrb[0].mxu0
        %v441 = vadd.f32 0.0, %v440
        %v442 = vpop.f32.mrb[0].mxu0
        %443 = vdwg.mxu0
        %445 = vset.pattern.permute.xlu0 0
        %446 = vperm.xlu0 %445, %v345
        %v447 = vpop.permute.xlu0 %446
        %450 = vset.pattern.permute.xlu0 0
        %451 = vperm.xlu0 %450, %v346
        %v452 = vpop.permute.xlu0 %451
        %v454 = vmul.f32 %v436, %v447
        %v455 = vmul.f32 %v441, %v452
        %456 = vset.pattern.permute.xlu0 1
        %457 = vperm.xlu0 %456, %v345
        %v458 = vpop.permute.xlu0 %457
        %460 = vset.pattern.permute.xlu0 1
        %461 = vperm.xlu0 %460, %v346
        %v462 = vpop.permute.xlu0 %461
        %v464 = vadd.f32 %v454, %v458
        %v465 = vadd.f32 %v455, %v462
        %v466 = vmax.f32 %v464, 0.0
        %v467 = vmax.f32 %v465, 0.0
        %vm468 = vcmask 130048
        %v470 = vsel %vm468, %v357, 0
        %v473 = vsel %vm468, %v358, 0
        %475 = vmatprep.subr.mxu0 0.0
        %476 = vmatpush1.msra.mxu0 %v466
        %477 = vmatprep.subr.mxu0 0.0
        %478 = vmatpush1.msra.mxu0 %v467
        %479 = vmatprep.subr.mxu0 0.0
        %480 = vmatpush1.msra.mxu0 0.0
        %481 = vmatprep.subr.mxu0 0.0
        %482 = vmatpush1.msra.mxu0 0.0
        %483 = vmatprep.subr.mxu0 0.0
        %484 = vmatpush1.msra.mxu0 0.0
        %485 = vmatprep.subr.mxu0 0.0
        %486 = vmatpush1.msra.mxu0 0.0
        %487 = vmatprep.subr.mxu0 0.0
        %488 = vmatpush1.msra.mxu0 0.0
        %489 = vmatprep.subr.mxu0 0.0
        %490 = vmatpush1.msra.mxu0 0.0
        %491 = vmatprep.subr.mxu0 0.0
        %492 = vmatpush1.msra.mxu0 0.0
        %493 = vmatprep.subr.mxu0 0.0
        %494 = vmatpush1.msra.mxu0 0.0
        %495 = vmatprep.subr.mxu0 0.0
        %496 = vmatpush1.msra.mxu0 0.0
        %497 = vmatprep.subr.mxu0 0.0
        %498 = vmatpush1.msra.mxu0 0.0
        %499 = vmatprep.subr.mxu0 0.0
        %500 = vmatpush1.msra.mxu0 0.0
        %501 = vmatprep.subr.mxu0 0.0
        %502 = vmatpush1.msra.mxu0 0.0
        %503 = vmatprep.subr.mxu0 0.0
        %504 = vmatpush1.msra.mxu0 0.0
        %505 = vmatprep.subr.mxu0 0.0
        %506 = vmatpush1.msra.mxu0 0.0
        %507 = vmatprep.subr.mxu0 0.0
        %508 = vmatpush1.msra.mxu0 0.0
        %509 = vmatprep.subr.mxu0 0.0
        %510 = vmatpush1.msra.mxu0 0.0
        %511 = vmatprep.subr.mxu0 0.0
        %512 = vmatpush1.msra.mxu0 0.0
        %513 = vmatprep.subr.mxu0 0.0
        %514 = vmatpush1.msra.mxu0 0.0
        %515 = vmatprep.subr.mxu0 0.0
        %516 = vmatpush1.msra.mxu0 0.0
        %517 = vmatprep.subr.mxu0 0.0
        %518 = vmatpush1.msra.mxu0 0.0
        %519 = vmatprep.subr.mxu0 0.0
        %520 = vmatpush1.msra.mxu0 0.0
        %521 = vmatprep.subr.mxu0 0.0
        %522 = vmatpush1.msra.mxu0 0.0
        %523 = vmatprep.subr.mxu0 0.0
        %524 = vmatpush1.msra.mxu0 0.0
        %525 = vmatprep.subr.mxu0 0.0
        %526 = vmatpush1.msra.mxu0 0.0
        %527 = vmatprep.subr.mxu0 0.0
        %528 = vmatpush1.msra.mxu0 0.0
        %529 = vmatprep.subr.mxu0 0.0
        %530 = vmatpush1.msra.mxu0 0.0
        %531 = vmatprep.subr.mxu0 0.0
        %532 = vmatpush1.msra.mxu0 0.0
        %533 = vmatprep.subr.mxu0 0.0
        %534 = vmatpush1.msra.mxu0 0.0
        %535 = vmatprep.subr.mxu0 0.0
        %536 = vmatpush1.msra.mxu0 0.0
        %537 = vmatprep.subr.mxu0 0.0
        %538 = vmatpush1.msra.mxu0 0.0
        %539 = vmatprep.mubr.f32.mxu0 0.0
        %540 = vmatmul.mubr.f32.gmra.mrb[0].mxu0 %v470
        %v541 = vpop.f32.mrb[0].mxu0
        %v542 = vadd.f32 0.0, %v541
        %v543 = vpop.f32.mrb[0].mxu0
        %544 = vmatprep.mubr.f32.mxu0 0.0
        %545 = vmatmul.mubr.f32.gmra.mrb[0].mxu0 %v473
        %v546 = vpop.f32.mrb[0].mxu0
        %v547 = vadd.f32 0.0, %v546
        %v548 = vpop.f32.mrb[0].mxu0
        %549 = vdwg.mxu0
        %550 = vset.pattern.permute.xlu0 2
        %551 = vperm.xlu0 %550, %v345
        %v552 = vpop.permute.xlu0 %551
        %554 = vset.pattern.permute.xlu0 2
        %555 = vperm.xlu0 %554, %v346
        %v556 = vpop.permute.xlu0 %555
        %v558 = vmul.f32 %v542, %v552
        %v559 = vmul.f32 %v547, %v556
        %560 = vset.pattern.permute.xlu0 3
        %561 = vperm.xlu0 %560, %v345
        %v562 = vpop.permute.xlu0 %561
        %564 = vset.pattern.permute.xlu0 3
        %565 = vperm.xlu0 %564, %v346
        %v566 = vpop.permute.xlu0 %565
        %v568 = vadd.f32 %v558, %v562
        %v569 = vadd.f32 %v559, %v566
        %v570 = vmax.f32 %v568, 0.0
        %v571 = vmax.f32 %v569, 0.0
        %v573 = vsel %vm362, %v352, 0
        %v576 = vsel %vm362, %v353, 0
        %578 = vmatprep.subr.mxu0 0.0
        %579 = vmatpush1.msra.mxu0 %v344
        %580 = vmatprep.subr.mxu0 0.0
        %581 = vmatpush1.msra.mxu0 0.0
        %582 = vmatprep.subr.mxu0 0.0
        %583 = vmatpush1.msra.mxu0 0.0
        %584 = vmatprep.subr.mxu0 0.0
        %585 = vmatpush1.msra.mxu0 0.0
        %586 = vmatprep.subr.mxu0 0.0
        %587 = vmatpush1.msra.mxu0 0.0
        %588 = vmatprep.subr.mxu0 0.0
        %589 = vmatpush1.msra.mxu0 0.0
        %590 = vmatprep.subr.mxu0 0.0
        %591 = vmatpush1.msra.mxu0 0.0
        %592 = vmatprep.subr.mxu0 0.0
        %593 = vmatpush1.msra.mxu0 0.0
        %594 = vmatprep.subr.mxu0 0.0
        %595 = vmatpush1.msra.mxu0 0.0
        %596 = vmatprep.subr.mxu0 0.0
        %597 = vmatpush1.msra.mxu0 0.0
        %598 = vmatprep.subr.mxu0 0.0
        %599 = vmatpush1.msra.mxu0 0.0
        %600 = vmatprep.subr.mxu0 0.0
        %601 = vmatpush1.msra.mxu0 0.0
        %602 = vmatprep.subr.mxu0 0.0
        %603 = vmatpush1.msra.mxu0 0.0
        %604 = vmatprep.subr.mxu0 0.0
        %605 = vmatpush1.msra.mxu0 0.0
        %606 = vmatprep.subr.mxu0 0.0
        %607 = vmatpush1.msra.mxu0 0.0
        %608 = vmatprep.subr.mxu0 0.0
        %609 = vmatpush1.msra.mxu0 0.0
        %610 = vmatprep.subr.mxu0 0.0
        %611 = vmatpush1.msra.mxu0 0.0
        %612 = vmatprep.subr.mxu0 0.0
        %613 = vmatpush1.msra.mxu0 0.0
        %614 = vmatprep.subr.mxu0 0.0
        %615 = vmatpush1.msra.mxu0 0.0
        %616 = vmatprep.subr.mxu0 0.0
        %617 = vmatpush1.msra.mxu0 0.0
        %618 = vmatprep.subr.mxu0 0.0
        %619 = vmatpush1.msra.mxu0 0.0
        %620 = vmatprep.subr.mxu0 0.0
        %621 = vmatpush1.msra.mxu0 0.0
        %622 = vmatprep.subr.mxu0 0.0
        %623 = vmatpush1.msra.mxu0 0.0
        %624 = vmatprep.subr.mxu0 0.0
        %625 = vmatpush1.msra.mxu0 0.0
        %626 = vmatprep.subr.mxu0 0.0
        %627 = vmatpush1.msra.mxu0 0.0
        %628 = vmatprep.subr.mxu0 0.0
        %629 = vmatpush1.msra.mxu0 0.0
        %630 = vmatprep.subr.mxu0 0.0
        %631 = vmatpush1.msra.mxu0 0.0
        %632 = vmatprep.subr.mxu0 0.0
        %633 = vmatpush1.msra.mxu0 0.0
        %634 = vmatprep.subr.mxu0 0.0
        %635 = vmatpush1.msra.mxu0 0.0
        %636 = vmatprep.subr.mxu0 0.0
        %637 = vmatpush1.msra.mxu0 0.0
        %638 = vmatprep.subr.mxu0 0.0
        %639 = vmatpush1.msra.mxu0 0.0
        %640 = vmatprep.subr.mxu0 0.0
        %641 = vmatpush1.msra.mxu0 0.0
        %642 = vmatprep.mubr.f32.mxu0 0.0
        %643 = vmatmul.mubr.f32.gmra.mrb[0].mxu0 %v573
        %v644 = vpop.f32.mrb[0].mxu0
        %v645 = vadd.f32 0.0, %v644
        %v646 = vpop.f32.mrb[0].mxu0
        %647 = vmatprep.mubr.f32.mxu0 0.0
        %648 = vmatmul.mubr.f32.gmra.mrb[0].mxu0 %v576
        %v649 = vpop.f32.mrb[0].mxu0
        %v650 = vadd.f32 0.0, %v649
        %v651 = vpop.f32.mrb[0].mxu0
        %652 = vdwg.mxu0
        %653 = vset.pattern.permute.xlu0 4
        %654 = vperm.xlu0 %653, %v345
        %v655 = vpop.permute.xlu0 %654
        %657 = vset.pattern.permute.xlu0 4
        %658 = vperm.xlu0 %657, %v346
        %v659 = vpop.permute.xlu0 %658
        %v661 = vmul.f32 %v645, %v655
        %v662 = vmul.f32 %v650, %v659
        %664 = vset.pattern.permute.xlu0 0
        %665 = vperm.xlu0 %664, %v347
        %v666 = vpop.permute.xlu0 %665
        %669 = vset.pattern.permute.xlu0 0
        %670 = vperm.xlu0 %669, %v348
        %v671 = vpop.permute.xlu0 %670
        %v673 = vadd.f32 %v661, %v666
        %v674 = vadd.f32 %v662, %v671
        %v675 = vmax.f32 %v673, 0.0
        %v676 = vmax.f32 %v674, 0.0
        %v678 = vsel %vm468, %v360, 0
        %v681 = vsel %vm468, %v361, 0
        %683 = vmatprep.subr.mxu0 0.0
        %684 = vmatpush1.msra.mxu0 %v675
        %685 = vmatprep.subr.mxu0 0.0
        %686 = vmatpush1.msra.mxu0 %v676
        %687 = vmatprep.subr.mxu0 0.0
        %688 = vmatpush1.msra.mxu0 0.0
        %689 = vmatprep.subr.mxu0 0.0
        %690 = vmatpush1.msra.mxu0 0.0
        %691 = vmatprep.subr.mxu0 0.0
        %692 = vmatpush1.msra.mxu0 0.0
        %693 = vmatprep.subr.mxu0 0.0
        %694 = vmatpush1.msra.mxu0 0.0
        %695 = vmatprep.subr.mxu0 0.0
        %696 = vmatpush1.msra.mxu0 0.0
        %697 = vmatprep.subr.mxu0 0.0
        %698 = vmatpush1.msra.mxu0 0.0
        %699 = vmatprep.subr.mxu0 0.0
        %700 = vmatpush1.msra.mxu0 0.0
        %701 = vmatprep.subr.mxu0 0.0
        %702 = vmatpush1.msra.mxu0 0.0
        %703 = vmatprep.subr.mxu0 0.0
        %704 = vmatpush1.msra.mxu0 0.0
        %705 = vmatprep.subr.mxu0 0.0
        %706 = vmatpush1.msra.mxu0 0.0
        %707 = vmatprep.subr.mxu0 0.0
        %708 = vmatpush1.msra.mxu0 0.0
        %709 = vmatprep.subr.mxu0 0.0
        %710 = vmatpush1.msra.mxu0 0.0
        %711 = vmatprep.subr.mxu0 0.0
        %712 = vmatpush1.msra.mxu0 0.0
        %713 = vmatprep.subr.mxu0 0.0
        %714 = vmatpush1.msra.mxu0 0.0
        %715 = vmatprep.subr.mxu0 0.0
        %716 = vmatpush1.msra.mxu0 0.0
        %717 = vmatprep.subr.mxu0 0.0
        %718 = vmatpush1.msra.mxu0 0.0
        %719 = vmatprep.subr.mxu0 0.0
        %720 = vmatpush1.msra.mxu0 0.0
        %721 = vmatprep.subr.mxu0 0.0
        %722 = vmatpush1.msra.mxu0 0.0
        %723 = vmatprep.subr.mxu0 0.0
        %724 = vmatpush1.msra.mxu0 0.0
        %725 = vmatprep.subr.mxu0 0.0
        %726 = vmatpush1.msra.mxu0 0.0
        %727 = vmatprep.subr.mxu0 0.0
        %728 = vmatpush1.msra.mxu0 0.0
        %729 = vmatprep.subr.mxu0 0.0
        %730 = vmatpush1.msra.mxu0 0.0
        %731 = vmatprep.subr.mxu0 0.0
        %732 = vmatpush1.msra.mxu0 0.0
        %733 = vmatprep.subr.mxu0 0.0
        %734 = vmatpush1.msra.mxu0 0.0
        %735 = vmatprep.subr.mxu0 0.0
        %736 = vmatpush1.msra.mxu0 0.0
        %737 = vmatprep.subr.mxu0 0.0
        %738 = vmatpush1.msra.mxu0 0.0
        %739 = vmatprep.subr.mxu0 0.0
        %740 = vmatpush1.msra.mxu0 0.0
        %741 = vmatprep.subr.mxu0 0.0
        %742 = vmatpush1.msra.mxu0 0.0
        %743 = vmatprep.subr.mxu0 0.0
        %744 = vmatpush1.msra.mxu0 0.0
        %745 = vmatprep.subr.mxu0 0.0
        %746 = vmatpush1.msra.mxu0 0.0
        %747 = vmatprep.mubr.f32.mxu0 0.0
        %748 = vmatmul.mubr.f32.gmra.mrb[0].mxu0 %v678
        %v749 = vpop.f32.mrb[0].mxu0
        %v750 = vadd.f32 0.0, %v749
        %v751 = vpop.f32.mrb[0].mxu0
        %752 = vmatprep.mubr.f32.mxu0 0.0
        %753 = vmatmul.mubr.f32.gmra.mrb[0].mxu0 %v681
        %v754 = vpop.f32.mrb[0].mxu0
        %v755 = vadd.f32 0.0, %v754
        %v756 = vpop.f32.mrb[0].mxu0
        %757 = vdwg.mxu0
        %758 = vset.pattern.permute.xlu0 5
        %759 = vperm.xlu0 %758, %v345
        %v760 = vpop.permute.xlu0 %759
        %762 = vset.pattern.permute.xlu0 5
        %763 = vperm.xlu0 %762, %v346
        %v764 = vpop.permute.xlu0 %763
        %v766 = vmul.f32 %v750, %v760
        %v767 = vmul.f32 %v755, %v764
        %768 = vset.pattern.permute.xlu0 6
        %769 = vperm.xlu0 %768, %v345
        %v770 = vpop.permute.xlu0 %769
        %772 = vset.pattern.permute.xlu0 6
        %773 = vperm.xlu0 %772, %v346
        %v774 = vpop.permute.xlu0 %773
        %v776 = vadd.f32 %v766, %v770
        %v777 = vadd.f32 %v767, %v774
        %v778 = vmax.f32 %v776, 0.0
        %v779 = vmax.f32 %v777, 0.0
        %v781 = vsel %vm362, %v355, 0
        %v784 = vsel %vm362, %v356, 0
        %786 = vmatprep.subr.mxu0 0.0
        %787 = vmatpush1.msra.mxu0 %v344
        %788 = vmatprep.subr.mxu0 0.0
        %789 = vmatpush1.msra.mxu0 0.0
        %790 = vmatprep.subr.mxu0 0.0
        %791 = vmatpush1.msra.mxu0 0.0
        %792 = vmatprep.subr.mxu0 0.0
        %793 = vmatpush1.msra.mxu0 0.0
        %794 = vmatprep.subr.mxu0 0.0
        %795 = vmatpush1.msra.mxu0 0.0
        %796 = vmatprep.subr.mxu0 0.0
        %797 = vmatpush1.msra.mxu0 0.0
        %798 = vmatprep.subr.mxu0 0.0
        %799 = vmatpush1.msra.mxu0 0.0
        %800 = vmatprep.subr.mxu0 0.0
        %801 = vmatpush1.msra.mxu0 0.0
        %802 = vmatprep.subr.mxu0 0.0
        %803 = vmatpush1.msra.mxu0 0.0
        %804 = vmatprep.subr.mxu0 0.0
        %805 = vmatpush1.msra.mxu0 0.0
        %806 = vmatprep.subr.mxu0 0.0
        %807 = vmatpush1.msra.mxu0 0.0
        %808 = vmatprep.subr.mxu0 0.0
        %809 = vmatpush1.msra.mxu0 0.0
        %810 = vmatprep.subr.mxu0 0.0
        %811 = vmatpush1.msra.mxu0 0.0
        %812 = vmatprep.subr.mxu0 0.0
        %813 = vmatpush1.msra.mxu0 0.0
        %814 = vmatprep.subr.mxu0 0.0
        %815 = vmatpush1.msra.mxu0 0.0
        %816 = vmatprep.subr.mxu0 0.0
        %817 = vmatpush1.msra.mxu0 0.0
        %818 = vmatprep.subr.mxu0 0.0
        %819 = vmatpush1.msra.mxu0 0.0
        %820 = vmatprep.subr.mxu0 0.0
        %821 = vmatpush1.msra.mxu0 0.0
        %822 = vmatprep.subr.mxu0 0.0
        %823 = vmatpush1.msra.mxu0 0.0
        %824 = vmatprep.subr.mxu0 0.0
        %825 = vmatpush1.msra.mxu0 0.0
        %826 = vmatprep.subr.mxu0 0.0
        %827 = vmatpush1.msra.mxu0 0.0
        %828 = vmatprep.subr.mxu0 0.0
        %829 = vmatpush1.msra.mxu0 0.0
        %830 = vmatprep.subr.mxu0 0.0
        %831 = vmatpush1.msra.mxu0 0.0
        %832 = vmatprep.subr.mxu0 0.0
        %833 = vmatpush1.msra.mxu0 0.0
        %834 = vmatprep.subr.mxu0 0.0
        %835 = vmatpush1.msra.mxu0 0.0
        %836 = vmatprep.subr.mxu0 0.0
        %837 = vmatpush1.msra.mxu0 0.0
        %838 = vmatprep.subr.mxu0 0.0
        %839 = vmatpush1.msra.mxu0 0.0
        %840 = vmatprep.subr.mxu0 0.0
        %841 = vmatpush1.msra.mxu0 0.0
        %842 = vmatprep.subr.mxu0 0.0
        %843 = vmatpush1.msra.mxu0 0.0
        %844 = vmatprep.subr.mxu0 0.0
        %845 = vmatpush1.msra.mxu0 0.0
        %846 = vmatprep.subr.mxu0 0.0
        %847 = vmatpush1.msra.mxu0 0.0
        %848 = vmatprep.subr.mxu0 0.0
        %849 = vmatpush1.msra.mxu0 0.0
        %850 = vmatprep.mubr.f32.mxu0 0.0
        %851 = vmatmul.mubr.f32.gmra.mrb[0].mxu0 %v781
        %v852 = vpop.f32.mrb[0].mxu0
        %v853 = vadd.f32 0.0, %v852
        %v854 = vpop.f32.mrb[0].mxu0
        %855 = vmatprep.mubr.f32.mxu0 0.0
        %856 = vmatmul.mubr.f32.gmra.mrb[0].mxu0 %v784
        %v857 = vpop.f32.mrb[0].mxu0
        %v858 = vadd.f32 0.0, %v857
        %v859 = vpop.f32.mrb[0].mxu0
        %860 = vdwg.mxu0
        %861 = vset.pattern.permute.xlu0 7
        %862 = vperm.xlu0 %861, %v345
        %v863 = vpop.permute.xlu0 %862
        %865 = vset.pattern.permute.xlu0 7
        %866 = vperm.xlu0 %865, %v346
        %v867 = vpop.permute.xlu0 %866
        %v869 = vmul.f32 %v853, %v863
        %v870 = vmul.f32 %v858, %v867
        %871 = vset.pattern.permute.xlu0 1
        %872 = vperm.xlu0 %871, %v347
        %v873 = vpop.permute.xlu0 %872
        %875 = vset.pattern.permute.xlu0 1
        %876 = vperm.xlu0 %875, %v348
        %v877 = vpop.permute.xlu0 %876
        %v879 = vadd.f32 %v869, %v873
        %v880 = vadd.f32 %v870, %v877
        %v881 = vmax.f32 %v879, 0.0
        %v882 = vmax.f32 %v880, 0.0
        %883 = vst [vmem:[%s316] sm:$0xff] %v570
        %884 = vst [vmem:[%s316 + $0x8] sm:$0xff] %v571
        %885 = vst [vmem:[%s323] sm:$0xff] %v778
        %886 = vst [vmem:[%s323 + $0x8] sm:$0xff] %v779
        %887 = vst [vmem:[%s330] sm:$0xff] %v881
        %888 = vst [vmem:[%s330 + $0x8] sm:$0xff] %v882
        %s889 = sand.u32 %s164, 1
        %s890 = scalar_lea.sflag [#allocation3], %s889
        %s891 = sand.u32 %s164, 1
        %s892 = smul.addr %s891, 16
        %s893 = scalar_lea.vmem [#allocation2], %s892
        %s894 = sand.u32 %s25, 1
        %s895 = scalar_lea.sflag [#allocation5], %s894
        %s896 = sand.u32 %s192, 1
        %s897 = smul.addr %s896, 16
        %s898 = scalar_lea.vmem [#allocation4], %s897
        %s899 = sand.u32 %s25, 1
        %s900 = scalar_lea.sflag [#allocation5], %s899
        %s901 = sand.u32 %s220, 1
        %s902 = smul.addr %s901, 16
        %s903 = scalar_lea.vmem [#allocation6], %s902
        // Predicated region
        $region41: #{tpu_custom_call.1} parent=39 // pred_check
          %p904 = pneg %p174
        $region42: #{tpu_custom_call.1} parent=39 // pred_check_branch
          %906 = sbr.rel (%p904) target = $region44
        $region43: #{tpu_custom_call.1} parent=39 // pred_region
          %s908 = ssub.s32 256, 256
          %909 = vsyncadd %s890, %s908
          %s910 = smul.addr %s29, 4
          %s911 = sadd.s32 %s30, %s910
          %s912 = smul.addr %s911, 128
          %s913 = scalar_lea.hbm %s5, %s912
          %s914 = sshll.u32 %s893, 4
          %s915 = int_to_ptr.vmem [resolvable:$true] %s914
          %920 = dma.vmem_to_hbm [thread:$0]  %s915, 256, %s913, %s890, 128, 256, 8
        $region44: #{tpu_custom_call.1} parent=39 // pred_fallthru
          _
        // Predicated region
        $region45: #{tpu_custom_call.1} parent=39 // pred_check
          %p921 = pneg %p202
        $region46: #{tpu_custom_call.1} parent=39 // pred_check_branch
          %923 = sbr.rel (%p921) target = $region48
        $region47: #{tpu_custom_call.1} parent=39 // pred_region
          %s925 = ssub.s32 256, 256
          %926 = vsyncadd %s895, %s925
          %s927 = smul.addr %s29, 4
          %s928 = sadd.s32 %s30, %s927
          %s929 = smul.addr %s928, 128
          %s930 = scalar_lea.hbm %s6, %s929
          %s931 = sshll.u32 %s898, 4
          %s932 = int_to_ptr.vmem [resolvable:$true] %s931
          %937 = dma.vmem_to_hbm [thread:$0]  %s932, 256, %s930, %s895, 128, 256, 8
        $region48: #{tpu_custom_call.1} parent=39 // pred_fallthru
          _
        // Predicated region
        $region49: #{tpu_custom_call.1} parent=39 // pred_check
          %p938 = pneg %p230
        $region50: #{tpu_custom_call.1} parent=39 // pred_check_branch
          %940 = sbr.rel (%p938) target = $region52
        $region51: #{tpu_custom_call.1} parent=39 // pred_region
          %s942 = ssub.s32 256, 256
          %943 = vsyncadd %s900, %s942
          %s944 = smul.addr %s29, 4
          %s945 = sadd.s32 %s30, %s944
          %s946 = smul.addr %s945, 128
          %s947 = scalar_lea.hbm %s7, %s946
          %s948 = sshll.u32 %s903, 4
          %s949 = int_to_ptr.vmem [resolvable:$true] %s948
          %954 = dma.vmem_to_hbm [thread:$0]  %s949, 256, %s947, %s900, 128, 256, 8
        $region52: #{tpu_custom_call.1} parent=39 // pred_fallthru
          _
      $region40: #{tpu_custom_call.1} parent=5 // pred_fallthru
        _
      %p955 = scmp.le.s32.totalorder 2, %s20
      // Predicated region
      $region53: #{tpu_custom_call.1} parent=5 // pred_check
        %p956 = pneg %p955
      $region54: #{tpu_custom_call.1} parent=5 // pred_check_branch
        %958 = sbr.rel (%p956) target = $region56
      $region55: #{tpu_custom_call.1} parent=5 // pred_region
        %s959 = ssub.s32 %s20, 2
        // Predicated region
        $region57: #{tpu_custom_call.1} parent=55 // pred_check
          %p960 = pneg %p180
        $region58: #{tpu_custom_call.1} parent=55 // pred_check_branch
          %962 = sbr.rel (%p960) target = $region60
        $region59: #{tpu_custom_call.1} parent=55 // pred_region
          %s963 = sand.u32 %s165, 1
          %s964 = scalar_lea.sflag [#allocation3], %s963
          %s965 = sand.u32 %s165, 1
          %s966 = smul.addr %s965, 16
          %s967 = scalar_lea.vmem [#allocation2], %s966
          %968 = dma.done %s964, 256
        $region60: #{tpu_custom_call.1} parent=55 // pred_fallthru
          _
        // Predicated region
        $region61: #{tpu_custom_call.1} parent=55 // pred_check
          %p969 = pneg %p208
        $region62: #{tpu_custom_call.1} parent=55 // pred_check_branch
          %971 = sbr.rel (%p969) target = $region64
        $region63: #{tpu_custom_call.1} parent=55 // pred_region
          %s972 = sand.u32 %s26, 1
          %s973 = scalar_lea.sflag [#allocation5], %s972
          %s974 = sand.u32 %s193, 1
          %s975 = smul.addr %s974, 16
          %s976 = scalar_lea.vmem [#allocation4], %s975
          %977 = dma.done %s973, 256
        $region64: #{tpu_custom_call.1} parent=55 // pred_fallthru
          _
        // Predicated region
        $region65: #{tpu_custom_call.1} parent=55 // pred_check
          %p978 = pneg %p236
        $region66: #{tpu_custom_call.1} parent=55 // pred_check_branch
          %980 = sbr.rel (%p978) target = $region68
        $region67: #{tpu_custom_call.1} parent=55 // pred_region
          %s981 = sand.u32 %s26, 1
          %s982 = scalar_lea.sflag [#allocation5], %s981
          %s983 = sand.u32 %s221, 1
          %s984 = smul.addr %s983, 16
          %s985 = scalar_lea.vmem [#allocation6], %s984
          %986 = dma.done %s982, 256
        $region68: #{tpu_custom_call.1} parent=55 // pred_fallthru
          _
      $region56: #{tpu_custom_call.1} parent=5 // pred_fallthru
        _
    $region6: #{tpu_custom_call.1} parent=1 // loop_footer
      %s24 = sadd.s32 1, %s20
    $region7: #{tpu_custom_call.1} parent=1 // loop_footer_branch
      %19 = sbr.rel target = $region3
    $region8: #{tpu_custom_call.1} parent=1 // loop_exit
      _
    %987 = vsyncpa [#allocation3], 1
    %s988 = scalar_lea.sflag [#allocation3], 1
    %989 = vsyncpa %s988, 1
    %990 = vsyncpa [#allocation5], 1
    %s991 = scalar_lea.sflag [#allocation5], 1
    %992 = vsyncpa %s991, 1

</llo_original>
